<compile_context>
chip_gen: v5e
topology: v5e:2x2
jax: 0.10.0
libtpu: 0.0.40
codegen_flags: <defaults>
</compile_context>

<pallas_src>
import jax
import jax.numpy as jnp
from jax import lax
from jax.experimental import pallas as pl
from jax.experimental.pallas import tpu as pltpu

LANE = 128


def _round_up(x, m):
    return (x + m - 1) // m * m


def _tile(dim, target, unit):
    """Largest multiple of `unit` that divides `dim` and is <= target."""
    t = min(target, dim)
    t -= t % unit
    while t >= unit:
        if dim % t == 0:
            return t
        t -= unit
    return dim


# ----------------------------------------------------------------------------
# Pallas kernels
# ----------------------------------------------------------------------------
def linear_kernel(x_ref, w_ref, b_ref, o_ref):
    """o = x @ w + b on one (tm, tn) tile.  bf16 operands, f32 accumulation."""
    acc = jnp.dot(x_ref[...], w_ref[...], preferred_element_type=jnp.float32)
    o_ref[...] = (acc + b_ref[...]).astype(o_ref.dtype)


def pallas_linear(x, w, b, *, out_dtype=jnp.float32, tile_m=256, tile_n=1024):
    """x: (M, K) bf16, w: (K, N) bf16, b: (1, N) f32 -> (M, N) out_dtype.

    Gridded over (M, N) tiles; K kept whole (it is E or Hp, small enough that
    (tm, K) + (K, tn) tiles fit comfortably in VMEM with double buffering).
    """
    M, K = x.shape
    _, N = w.shape
    tm = _tile(M, tile_m, 8)      # M is a multiple of 8 (padded batch)
    tn = _tile(N, tile_n, LANE)   # N is a multiple of 128 (padded lanes)
    grid = (M // tm, N // tn)
    return pl.pallas_call(
        linear_kernel,
        out_shape=jax.ShapeDtypeStruct((M, N), out_dtype),
        grid_spec=pltpu.PrefetchScalarGridSpec(
            num_scalar_prefetch=0,
            grid=grid,
            in_specs=[
                pl.BlockSpec((tm, K), lambda i, j: (i, 0)),
                pl.BlockSpec((K, tn), lambda i, j: (0, j)),
                pl.BlockSpec((1, tn), lambda i, j: (0, j)),
            ],
            out_specs=pl.BlockSpec((tm, tn), lambda i, j: (i, j)),
        ),
        compiler_params=pltpu.CompilerParams(
            dimension_semantics=("parallel", "parallel")),
    )(x, w, b)


def lstm_chunk_kernel(gx_ref, whh_ref, h_out_ref, h_sc, c_sc):
    """One time-chunk of the LSTM recurrence.

    gx_ref   : (Tc, Bp, 4*Hp) bf16  precomputed x @ W_ih + (b_ih + b_hh)
    whh_ref  : (Hp, 4*Hp)     bf16  recurrent weight (padded rows/cols = 0)
    h_out_ref: (Tc, Bp, Hp)   bf16  hidden-state sequence for this chunk
    h_sc,c_sc: (Bp, Hp)       f32   state carried across grid steps (scratch)

    PyTorch gate order (i, f, g, o); gate k occupies lanes [k*Hp, (k+1)*Hp).
    """
    Tc, B, G4 = gx_ref.shape
    Hp = G4 // 4

    @pl.when(pl.program_id(0) == 0)
    def _():
        h_sc[...] = jnp.zeros_like(h_sc)
        c_sc[...] = jnp.zeros_like(c_sc)

    whh = whh_ref[...]  # bf16, loaded once per chunk

    def step(t, carry):
        h, c = carry
        gates = gx_ref[t].astype(jnp.float32) + jnp.dot(
            h.astype(jnp.bfloat16), whh, preferred_element_type=jnp.float32
        )  # (Bp, 4*Hp) f32
        i = jax.nn.sigmoid(gates[:, 0 * Hp:1 * Hp])
        f = jax.nn.sigmoid(gates[:, 1 * Hp:2 * Hp])
        g = jnp.tanh(gates[:, 2 * Hp:3 * Hp])
        o = jax.nn.sigmoid(gates[:, 3 * Hp:4 * Hp])
        c_new = f * c + i * g
        h_new = o * jnp.tanh(c_new)
        h_out_ref[t] = h_new.astype(h_out_ref.dtype)
        return (h_new, c_new)

    # Unroll only within a chunk (Tc <= 8) -> LLO visibility without the
    # code-size / vreg-pressure blowup of unrolling all of T.
    h_last, c_last = lax.fori_loop(0, Tc, step, (h_sc[...], c_sc[...]),
                                   unroll=True)
    h_sc[...] = h_last
    c_sc[...] = c_last


def pallas_lstm(gates_x, w_hh_p, *, chunk=8):
    """gates_x: (T, Bp, 4*Hp) bf16, w_hh_p: (Hp, 4*Hp) bf16 -> (T, Bp, Hp) bf16.

    Grid over time chunks so gx streams through VMEM (pipelined DMA) and VMEM
    use is bounded by 2 chunks instead of the whole sequence.
    """
    T, B, G4 = gates_x.shape
    Hp = G4 // 4
    Tc = _tile(T, chunk, 1)
    grid = (T // Tc,)
    return pl.pallas_call(
        lstm_chunk_kernel,
        out_shape=jax.ShapeDtypeStruct((T, B, Hp), jnp.bfloat16),
        grid_spec=pltpu.PrefetchScalarGridSpec(
            num_scalar_prefetch=0,
            grid=grid,
            in_specs=[
                pl.BlockSpec((Tc, B, G4), lambda c: (c, 0, 0)),
                pl.BlockSpec((Hp, G4), lambda c: (0, 0)),
            ],
            out_specs=pl.BlockSpec((Tc, B, Hp), lambda c: (c, 0, 0)),
            scratch_shapes=[
                pltpu.VMEM((B, Hp), jnp.float32),   # h state
                pltpu.VMEM((B, Hp), jnp.float32),   # c state
            ],
        ),
        compiler_params=pltpu.CompilerParams(
            dimension_semantics=("arbitrary",)),   # serial carry over time
    )(gates_x, w_hh_p)


# ----------------------------------------------------------------------------
# Parameters (padded, bf16, kernel-friendly layout) + forward pass
# ----------------------------------------------------------------------------
def init_params(key, *, embed_size, hidden_size, vocab_size):
    """DecoderRNN-equivalent parameters.

    - LSTM weights stored transposed ((in, 4H) not (4H, in)); the two PyTorch
      biases are pre-summed (b_ih + b_hh).
    - Gate k placed at padded lane range [k*Hp, (k+1)*Hp); padded rows/columns
      are zero so padded lanes never contribute to real outputs.
    - Matmul weights are stored in bf16 (halves weight DMA bytes); biases f32.
    """
    H = hidden_size
    Hp = _round_up(H, LANE)
    V = vocab_size
    Vp = _round_up(V, LANE)
    ks = jax.random.split(key, 6)
    s = 0.1

    emb_table = jax.random.normal(ks[0], (V, embed_size), jnp.float32) * s
    w_ih = jax.random.normal(ks[1], (embed_size, 4 * H), jnp.float32) * s
    w_hh = jax.random.normal(ks[2], (H, 4 * H), jnp.float32) * s
    b_lstm = jax.random.normal(ks[3], (1, 4 * H), jnp.float32) * s  # b_ih + b_hh
    w_fcn = jax.random.normal(ks[4], (H, V), jnp.float32) * s
    b_fcn = jax.random.normal(ks[5], (1, V), jnp.float32) * s

    def gate_pad(w):  # (rows, 4H) -> (rows, 4Hp): zero-pad inside each gate block
        r = w.shape[0]
        return jnp.pad(
            w.reshape(r, 4, H), ((0, 0), (0, 0), (0, Hp - H))
        ).reshape(r, 4 * Hp)

    return {
        "emb_table": emb_table.astype(jnp.bfloat16),                       # (V, E)
        "w_ih_p": gate_pad(w_ih).astype(jnp.bfloat16),                     # (E, 4Hp)
        "w_hh_p": jnp.pad(gate_pad(w_hh),
                          ((0, Hp - H), (0, 0))).astype(jnp.bfloat16),     # (Hp, 4Hp)
        "b_lstm_p": gate_pad(b_lstm),                                      # (1, 4Hp) f32
        "w_fcn_p": jnp.pad(w_fcn,
                           ((0, Hp - H), (0, Vp - V))).astype(jnp.bfloat16),  # (Hp, Vp)
        "b_fcn_p": jnp.pad(b_fcn, ((0, 0), (0, Vp - V))),                  # (1, Vp) f32
    }


@jax.jit
def decoder_rnn_forward(params, features, captions):
    """DecoderRNN.forward(features, captions) -> logits (B, Tcap, vocab)."""
    B, E = features.shape
    V = params["emb_table"].shape[0]
    Hp = params["w_hh_p"].shape[0]
    G4 = params["w_ih_p"].shape[1]
    Vp = params["w_fcn_p"].shape[1]

    # Pad batch to a full sublane group: unmasked stores + better MXU rows.
    Bp = _round_up(B, 8)
    feats_p = jnp.pad(features, ((0, Bp - B), (0, 0))).astype(jnp.bfloat16)
    caps_p = jnp.pad(captions, ((0, Bp - B), (0, 0)))

    # TODO(synk): nn.Embedding gather stays in XLA glue (jnp.take), not Pallas.
    # Built time-major so the recurrence needs no activation transposes.
    embeds_tm = jnp.take(params["emb_table"], caps_p[:, :-1].T, axis=0)  # (T-1,Bp,E)
    x_tm = jnp.concatenate([feats_p[None, :, :], embeds_tm], axis=0)     # (T,Bp,E) bf16
    T = x_tm.shape[0]

    # Hoisted input projection: one tiled GEMM over every time step (bf16 out).
    gates_x = pallas_linear(
        x_tm.reshape(T * Bp, E), params["w_ih_p"], params["b_lstm_p"],
        out_dtype=jnp.bfloat16,
    ).reshape(T, Bp, G4)

    # Recurrence: single pallas_call, time-chunked gx streaming, h/c in scratch.
    h_seq = pallas_lstm(gates_x, params["w_hh_p"])                       # (T,Bp,Hp) bf16

    # Transpose the SMALL h tensor (not the big logits) to batch-major so the
    # fcn kernel writes logits directly in (B, T, Vp) layout.
    h_bt = jnp.transpose(h_seq, (1, 0, 2)).reshape(Bp * T, Hp)

    logits_p = pallas_linear(
        h_bt, params["w_fcn_p"], params["b_fcn_p"], out_dtype=jnp.float32,
    ).reshape(Bp, T, Vp)

    # De-pad batch and vocab (downstream could instead consume padded lanes
    # directly and mask >= V in the loss).
    return logits_p[:B, :, :V]


# ----------------------------------------------------------------------------
if __name__ == "__main__":
    B = 2
    embed_size = 32
    hidden_size = 32
    vocab_size = 40
    Tcap = 8

    key = jax.random.PRNGKey(0)
    k_feat, k_cap, k_par = jax.random.split(key, 3)

    features = jax.random.normal(k_feat, (B, embed_size), jnp.float32)
    captions = jax.random.randint(k_cap, (B, Tcap), 0, vocab_size, jnp.int32)

    params = init_params(
        k_par,
        embed_size=embed_size,
        hidden_size=hidden_size,
        vocab_size=vocab_size,
    )

    out = decoder_rnn_forward(params, features, captions)
    jax.block_until_ready(out)
    assert out.shape == (B, Tcap, vocab_size), out.shape
    print("KERNEL_OK")
</pallas_src>

<mosaic_0001>
module attributes {stable_mosaic.version = 11 : i64} {
  func.func @linear_kernel(%arg0: i32, %arg1: i32, %arg2: memref<64x32xbf16, #tpu.memory_space<vmem>>, %arg3: memref<32x512xbf16, #tpu.memory_space<vmem>>, %arg4: memref<1x512xf32, #tpu.memory_space<vmem>>, %arg5: memref<64x512xbf16, #tpu.memory_space<vmem>>) attributes {dimension_semantics = [#tpu.dimension_semantics<parallel>, #tpu.dimension_semantics<parallel>], iteration_bounds = array<i64: 1, 1>, scalar_prefetch = 0 : i64, scratch_operands = 0 : i64, tpu.core_type = #tpu.core_type<tc>, window_params = [{transform_indices = @transform_0, window_bounds = array<i64: 64, 32>}, {transform_indices = @transform_1, window_bounds = array<i64: 32, 512>}, {transform_indices = @transform_2, window_bounds = array<i64: 1, 512>}, {transform_indices = @transform_3, window_bounds = array<i64: 64, 512>}]} {
    %c0 = arith.constant 0 : index
    %c0_0 = arith.constant 0 : index
    %0 = vector.load %arg2[%c0, %c0_0] : memref<64x32xbf16, #tpu.memory_space<vmem>>, vector<64x32xbf16>
    %c0_1 = arith.constant 0 : index
    %c0_2 = arith.constant 0 : index
    %1 = vector.load %arg3[%c0_1, %c0_2] : memref<32x512xbf16, #tpu.memory_space<vmem>>, vector<32x512xbf16>
    %cst = arith.constant dense<0.000000e+00> : vector<64x512xf32>
    %2 = tpu.matmul %0, %1, %cst {dimension_numbers = #tpu.dot_dimension_numbers<[1], [0], [0], [1], [0, 0, 1, 1], [], []>} : vector<64x32xbf16>, vector<32x512xbf16>, vector<64x512xf32> -> vector<64x512xf32>
    %c0_3 = arith.constant 0 : index
    %c0_4 = arith.constant 0 : index
    %3 = vector.load %arg4[%c0_3, %c0_4] : memref<1x512xf32, #tpu.memory_space<vmem>>, vector<1x512xf32>
    %4 = vector.broadcast %3 : vector<1x512xf32> to vector<64x512xf32>
    %5 = arith.addf %2, %4 : vector<64x512xf32>
    %6 = arith.truncf %5 : vector<64x512xf32> to vector<64x512xbf16>
    %c0_5 = arith.constant 0 : index
    %c0_6 = arith.constant 0 : index
    %7 = vector.load %arg5[%c0_5, %c0_6] : memref<64x512xbf16, #tpu.memory_space<vmem>>, vector<64x512xbf16>
    tpu.vector_store %arg5[%c0_5, %c0_6], %6 {strides = array<i32>} : memref<64x512xbf16, #tpu.memory_space<vmem>>, vector<64x512xbf16>,
    return
  }
  func.func @transform_0(%arg0: i32, %arg1: i32) -> (i32, i32) {
    %c0_i32 = arith.constant 0 : i32
    %c0_i32_0 = arith.constant 0 : i32
    return %arg0, %c0_i32 : i32, i32
  }
  func.func @transform_1(%arg0: i32, %arg1: i32) -> (i32, i32) {
    %c0_i32 = arith.constant 0 : i32
    %c0_i32_0 = arith.constant 0 : i32
    return %c0_i32, %arg1 : i32, i32
  }
  func.func @transform_2(%arg0: i32, %arg1: i32) -> (i32, i32) {
    %c0_i32 = arith.constant 0 : i32
    %c0_i32_0 = arith.constant 0 : i32
    return %c0_i32, %arg1 : i32, i32
  }
  func.func @transform_3(%arg0: i32, %arg1: i32) -> (i32, i32) {
    %c0_i32 = arith.constant 0 : i32
    return %arg0, %arg1 : i32, i32
  }
}

module attributes {stable_mosaic.version = 11 : i64} {
  func.func @linear_kernel(%arg0: i32, %arg1: i32, %arg2: memref<64x128xbf16, #tpu.memory_space<vmem>>, %arg3: memref<128x128xbf16, #tpu.memory_space<vmem>>, %arg4: memref<1x128xf32, #tpu.memory_space<vmem>>, %arg5: memref<64x128xf32, #tpu.memory_space<vmem>>) attributes {dimension_semantics = [#tpu.dimension_semantics<parallel>, #tpu.dimension_semantics<parallel>], iteration_bounds = array<i64: 1, 1>, scalar_prefetch = 0 : i64, scratch_operands = 0 : i64, tpu.core_type = #tpu.core_type<tc>, window_params = [{transform_indices = @transform_0, window_bounds = array<i64: 64, 128>}, {transform_indices = @transform_1, window_bounds = array<i64: 128, 128>}, {transform_indices = @transform_2, window_bounds = array<i64: 1, 128>}, {transform_indices = @transform_3, window_bounds = array<i64: 64, 128>}]} {
    %c0 = arith.constant 0 : index
    %c0_0 = arith.constant 0 : index
    %0 = vector.load %arg2[%c0, %c0_0] : memref<64x128xbf16, #tpu.memory_space<vmem>>, vector<64x128xbf16>
    %c0_1 = arith.constant 0 : index
    %c0_2 = arith.constant 0 : index
    %1 = vector.load %arg3[%c0_1, %c0_2] : memref<128x128xbf16, #tpu.memory_space<vmem>>, vector<128x128xbf16>
    %cst = arith.constant dense<0.000000e+00> : vector<64x128xf32>
    %2 = tpu.matmul %0, %1, %cst {dimension_numbers = #tpu.dot_dimension_numbers<[1], [0], [0], [1], [0, 0, 1, 1], [], []>} : vector<64x128xbf16>, vector<128x128xbf16>, vector<64x128xf32> -> vector<64x128xf32>
    %c0_3 = arith.constant 0 : index
    %c0_4 = arith.constant 0 : index
    %3 = vector.load %arg4[%c0_3, %c0_4] : memref<1x128xf32, #tpu.memory_space<vmem>>, vector<1x128xf32>
    %4 = vector.broadcast %3 : vector<1x128xf32> to vector<64x128xf32>
    %5 = arith.addf %2, %4 : vector<64x128xf32>
    %c0_5 = arith.constant 0 : index
    %c0_6 = arith.constant 0 : index
    %6 = vector.load %arg5[%c0_5, %c0_6] : memref<64x128xf32, #tpu.memory_space<vmem>>, vector<64x128xf32>
    tpu.vector_store %arg5[%c0_5, %c0_6], %5 {strides = array<i32>} : memref<64x128xf32, #tpu.memory_space<vmem>>, vector<64x128xf32>,
    return
  }
  func.func @transform_0(%arg0: i32, %arg1: i32) -> (i32, i32) {
    %c0_i32 = arith.constant 0 : i32
    %c0_i32_0 = arith.constant 0 : i32
    return %arg0, %c0_i32 : i32, i32
  }
  func.func @transform_1(%arg0: i32, %arg1: i32) -> (i32, i32) {
    %c0_i32 = arith.constant 0 : i32
    %c0_i32_0 = arith.constant 0 : i32
    return %c0_i32, %arg1 : i32, i32
  }
  func.func @transform_2(%arg0: i32, %arg1: i32) -> (i32, i32) {
    %c0_i32 = arith.constant 0 : i32
    %c0_i32_0 = arith.constant 0 : i32
    return %c0_i32, %arg1 : i32, i32
  }
  func.func @transform_3(%arg0: i32, %arg1: i32) -> (i32, i32) {
    %c0_i32 = arith.constant 0 : i32
    return %arg0, %arg1 : i32, i32
  }
}

module attributes {stable_mosaic.version = 11 : i64} {
  func.func @lstm_chunk_kernel(%arg0: i32, %arg1: memref<8x8x512xbf16, #tpu.memory_space<vmem>>, %arg2: memref<128x512xbf16, #tpu.memory_space<vmem>>, %arg3: memref<8x8x128xbf16, #tpu.memory_space<vmem>>, %arg4: memref<8x128xf32, #tpu.memory_space<vmem>>, %arg5: memref<8x128xf32, #tpu.memory_space<vmem>>) attributes {dimension_semantics = [#tpu.dimension_semantics<arbitrary>], iteration_bounds = array<i64: 1>, scalar_prefetch = 0 : i64, scratch_operands = 2 : i64, tpu.core_type = #tpu.core_type<tc>, window_params = [{transform_indices = @transform_0, window_bounds = array<i64: 8, 8, 512>}, {pipeline_mode = #tpu.pipeline_mode<synchronous>, transform_indices = @transform_1, window_bounds = array<i64: 128, 512>}, {transform_indices = @transform_2, window_bounds = array<i64: 8, 8, 128>}]} {
    %c0_i32 = arith.constant 0 : i32
    %0 = arith.cmpi eq, %arg0, %c0_i32 : i32
    %1 = arith.extui %0 : i1 to i32
    %c0_i32_0 = arith.constant 0 : i32
    %2 = arith.cmpi ne, %1, %c0_i32_0 : i32
    scf.if %2 {
      %cst_74 = arith.constant 0.000000e+00 : f32
      %304 = vector.broadcast %cst_74 : f32 to vector<8x128xf32>
      %c0_75 = arith.constant 0 : index
      %c0_76 = arith.constant 0 : index
      %305 = vector.load %arg4[%c0_75, %c0_76] : memref<8x128xf32, #tpu.memory_space<vmem>>, vector<8x128xf32>
      tpu.vector_store %arg4[%c0_75, %c0_76], %304 {strides = array<i32>} : memref<8x128xf32, #tpu.memory_space<vmem>>, vector<8x128xf32>,
      %cst_77 = arith.constant 0.000000e+00 : f32
      %306 = vector.broadcast %cst_77 : f32 to vector<8x128xf32>
      %c0_78 = arith.constant 0 : index
      %c0_79 = arith.constant 0 : index
      %307 = vector.load %arg5[%c0_78, %c0_79] : memref<8x128xf32, #tpu.memory_space<vmem>>, vector<8x128xf32>
      tpu.vector_store %arg5[%c0_78, %c0_79], %306 {strides = array<i32>} : memref<8x128xf32, #tpu.memory_space<vmem>>, vector<8x128xf32>,
    } else {
    }
    %c0 = arith.constant 0 : index
    %c0_1 = arith.constant 0 : index
    %3 = vector.load %arg2[%c0, %c0_1] : memref<128x512xbf16, #tpu.memory_space<vmem>>, vector<128x512xbf16>
    %c0_2 = arith.constant 0 : index
    %c0_3 = arith.constant 0 : index
    %4 = vector.load %arg4[%c0_2, %c0_3] : memref<8x128xf32, #tpu.memory_space<vmem>>, vector<8x128xf32>
    %c0_4 = arith.constant 0 : index
    %c0_5 = arith.constant 0 : index
    %5 = vector.load %arg5[%c0_4, %c0_5] : memref<8x128xf32, #tpu.memory_space<vmem>>, vector<8x128xf32>
    %c0_i32_6 = arith.constant 0 : i32
    %6 = arith.index_cast %c0_i32_6 : i32 to index
    %c0_7 = arith.constant 0 : index
    %c0_8 = arith.constant 0 : index
    %7 = vector.load %arg1[%6, %c0_7, %c0_8] : memref<8x8x512xbf16, #tpu.memory_space<vmem>>, vector<1x8x512xbf16>
    %8 = vector.shape_cast %7 : vector<1x8x512xbf16> to vector<8x512xbf16>
    %9 = arith.extf %8 : vector<8x512xbf16> to vector<8x512xf32>
    %10 = arith.truncf %4 : vector<8x128xf32> to vector<8x128xbf16>
    %cst = arith.constant dense<0.000000e+00> : vector<8x512xf32>
    %11 = tpu.matmul %10, %3, %cst {dimension_numbers = #tpu.dot_dimension_numbers<[1], [0], [0], [1], [0, 0, 1, 1], [], []>} : vector<8x128xbf16>, vector<128x512xbf16>, vector<8x512xf32> -> vector<8x512xf32>
    %12 = arith.addf %9, %11 : vector<8x512xf32>
    %13 = vector.extract_strided_slice %12 {offsets = [0, 0], sizes = [8, 128], strides = [1, 1]} : vector<8x512xf32> to vector<8x128xf32>
    %14 = arith.negf %13 : vector<8x128xf32>
    %15 = math.exp %14 : vector<8x128xf32>
    %cst_9 = arith.constant 1.000000e+00 : f32
    %16 = vector.broadcast %cst_9 : f32 to vector<8x128xf32>
    %17 = arith.addf %16, %15 : vector<8x128xf32>
    %18 = arith.divf %16, %17 : vector<8x128xf32>
    %19 = vector.extract_strided_slice %12 {offsets = [0, 128], sizes = [8, 128], strides = [1, 1]} : vector<8x512xf32> to vector<8x128xf32>
    %20 = arith.negf %19 : vector<8x128xf32>
    %21 = math.exp %20 : vector<8x128xf32>
    %cst_10 = arith.constant 1.000000e+00 : f32
    %22 = vector.broadcast %cst_10 : f32 to vector<8x128xf32>
    %23 = arith.addf %22, %21 : vector<8x128xf32>
    %24 = arith.divf %22, %23 : vector<8x128xf32>
    %25 = vector.extract_strided_slice %12 {offsets = [0, 256], sizes = [8, 128], strides = [1, 1]} : vector<8x512xf32> to vector<8x128xf32>
    %26 = math.tanh %25 : vector<8x128xf32>
    %27 = vector.extract_strided_slice %12 {offsets = [0, 384], sizes = [8, 128], strides = [1, 1]} : vector<8x512xf32> to vector<8x128xf32>
    %28 = arith.negf %27 : vector<8x128xf32>
    %29 = math.exp %28 : vector<8x128xf32>
    %cst_11 = arith.constant 1.000000e+00 : f32
    %30 = vector.broadcast %cst_11 : f32 to vector<8x128xf32>
    %31 = arith.addf %30, %29 : vector<8x128xf32>
    %32 = arith.divf %30, %31 : vector<8x128xf32>
    %33 = arith.mulf %24, %5 : vector<8x128xf32>
    %34 = arith.mulf %18, %26 : vector<8x128xf32>
    %35 = arith.addf %33, %34 : vector<8x128xf32>
    %36 = math.tanh %35 : vector<8x128xf32>
    %37 = arith.mulf %32, %36 : vector<8x128xf32>
    %38 = arith.truncf %37 : vector<8x128xf32> to vector<8x128xbf16>
    %39 = arith.index_cast %c0_i32_6 : i32 to index
    %c0_12 = arith.constant 0 : index
    %c0_13 = arith.constant 0 : index
    %40 = vector.load %arg3[%39, %c0_12, %c0_13] : memref<8x8x128xbf16, #tpu.memory_space<vmem>>, vector<1x8x128xbf16>
    %41 = vector.shape_cast %40 : vector<1x8x128xbf16> to vector<8x128xbf16>
    %42 = vector.shape_cast %38 : vector<8x128xbf16> to vector<1x8x128xbf16>
    tpu.vector_store %arg3[%39, %c0_12, %c0_13], %42 {strides = array<i32>} : memref<8x8x128xbf16, #tpu.memory_space<vmem>>, vector<1x8x128xbf16>,
    %c1_i32 = arith.constant 1 : i32
    %43 = arith.index_cast %c1_i32 : i32 to index
    %c0_14 = arith.constant 0 : index
    %c0_15 = arith.constant 0 : index
    %44 = vector.load %arg1[%43, %c0_14, %c0_15] : memref<8x8x512xbf16, #tpu.memory_space<vmem>>, vector<1x8x512xbf16>
    %45 = vector.shape_cast %44 : vector<1x8x512xbf16> to vector<8x512xbf16>
    %46 = arith.extf %45 : vector<8x512xbf16> to vector<8x512xf32>
    %47 = arith.truncf %37 : vector<8x128xf32> to vector<8x128xbf16>
    %cst_16 = arith.constant dense<0.000000e+00> : vector<8x512xf32>
    %48 = tpu.matmul %47, %3, %cst_16 {dimension_numbers = #tpu.dot_dimension_numbers<[1], [0], [0], [1], [0, 0, 1, 1], [], []>} : vector<8x128xbf16>, vector<128x512xbf16>, vector<8x512xf32> -> vector<8x512xf32>
    %49 = arith.addf %46, %48 : vector<8x512xf32>
    %50 = vector.extract_strided_slice %49 {offsets = [0, 0], sizes = [8, 128], strides = [1, 1]} : vector<8x512xf32> to vector<8x128xf32>
    %51 = arith.negf %50 : vector<8x128xf32>
    %52 = math.exp %51 : vector<8x128xf32>
    %cst_17 = arith.constant 1.000000e+00 : f32
    %53 = vector.broadcast %cst_17 : f32 to vector<8x128xf32>
    %54 = arith.addf %53, %52 : vector<8x128xf32>
    %55 = arith.divf %53, %54 : vector<8x128xf32>
    %56 = vector.extract_strided_slice %49 {offsets = [0, 128], sizes = [8, 128], strides = [1, 1]} : vector<8x512xf32> to vector<8x128xf32>
    %57 = arith.negf %56 : vector<8x128xf32>
    %58 = math.exp %57 : vector<8x128xf32>
    %cst_18 = arith.constant 1.000000e+00 : f32
    %59 = vector.broadcast %cst_18 : f32 to vector<8x128xf32>
    %60 = arith.addf %59, %58 : vector<8x128xf32>
    %61 = arith.divf %59, %60 : vector<8x128xf32>
    %62 = vector.extract_strided_slice %49 {offsets = [0, 256], sizes = [8, 128], strides = [1, 1]} : vector<8x512xf32> to vector<8x128xf32>
    %63 = math.tanh %62 : vector<8x128xf32>
    %64 = vector.extract_strided_slice %49 {offsets = [0, 384], sizes = [8, 128], strides = [1, 1]} : vector<8x512xf32> to vector<8x128xf32>
    %65 = arith.negf %64 : vector<8x128xf32>
    %66 = math.exp %65 : vector<8x128xf32>
    %cst_19 = arith.constant 1.000000e+00 : f32
    %67 = vector.broadcast %cst_19 : f32 to vector<8x128xf32>
    %68 = arith.addf %67, %66 : vector<8x128xf32>
    %69 = arith.divf %67, %68 : vector<8x128xf32>
    %70 = arith.mulf %61, %35 : vector<8x128xf32>
    %71 = arith.mulf %55, %63 : vector<8x128xf32>
    %72 = arith.addf %70, %71 : vector<8x128xf32>
    %73 = math.tanh %72 : vector<8x128xf32>
    %74 = arith.mulf %69, %73 : vector<8x128xf32>
    %75 = arith.truncf %74 : vector<8x128xf32> to vector<8x128xbf16>
    %76 = arith.index_cast %c1_i32 : i32 to index
    %c0_20 = arith.constant 0 : index
    %c0_21 = arith.constant 0 : index
    %77 = vector.load %arg3[%76, %c0_20, %c0_21] : memref<8x8x128xbf16, #tpu.memory_space<vmem>>, vector<1x8x128xbf16>
    %78 = vector.shape_cast %77 : vector<1x8x128xbf16> to vector<8x128xbf16>
    %79 = vector.shape_cast %75 : vector<8x128xbf16> to vector<1x8x128xbf16>
    tpu.vector_store %arg3[%76, %c0_20, %c0_21], %79 {strides = array<i32>} : memref<8x8x128xbf16, #tpu.memory_space<vmem>>, vector<1x8x128xbf16>,
    %c2_i32 = arith.constant 2 : i32
    %80 = arith.index_cast %c2_i32 : i32 to index
    %c0_22 = arith.constant 0 : index
    %c0_23 = arith.constant 0 : index
    %81 = vector.load %arg1[%80, %c0_22, %c0_23] : memref<8x8x512xbf16, #tpu.memory_space<vmem>>, vector<1x8x512xbf16>
    %82 = vector.shape_cast %81 : vector<1x8x512xbf16> to vector<8x512xbf16>
    %83 = arith.extf %82 : vector<8x512xbf16> to vector<8x512xf32>
    %84 = arith.truncf %74 : vector<8x128xf32> to vector<8x128xbf16>
    %cst_24 = arith.constant dense<0.000000e+00> : vector<8x512xf32>
    %85 = tpu.matmul %84, %3, %cst_24 {dimension_numbers = #tpu.dot_dimension_numbers<[1], [0], [0], [1], [0, 0, 1, 1], [], []>} : vector<8x128xbf16>, vector<128x512xbf16>, vector<8x512xf32> -> vector<8x512xf32>
    %86 = arith.addf %83, %85 : vector<8x512xf32>
    %87 = vector.extract_strided_slice %86 {offsets = [0, 0], sizes = [8, 128], strides = [1, 1]} : vector<8x512xf32> to vector<8x128xf32>
    %88 = arith.negf %87 : vector<8x128xf32>
    %89 = math.exp %88 : vector<8x128xf32>
    %cst_25 = arith.constant 1.000000e+00 : f32
    %90 = vector.broadcast %cst_25 : f32 to vector<8x128xf32>
    %91 = arith.addf %90, %89 : vector<8x128xf32>
    %92 = arith.divf %90, %91 : vector<8x128xf32>
    %93 = vector.extract_strided_slice %86 {offsets = [0, 128], sizes = [8, 128], strides = [1, 1]} : vector<8x512xf32> to vector<8x128xf32>
    %94 = arith.negf %93 : vector<8x128xf32>
    %95 = math.exp %94 : vector<8x128xf32>
    %cst_26 = arith.constant 1.000000e+00 : f32
    %96 = vector.broadcast %cst_26 : f32 to vector<8x128xf32>
    %97 = arith.addf %96, %95 : vector<8x128xf32>
    %98 = arith.divf %96, %97 : vector<8x128xf32>
    %99 = vector.extract_strided_slice %86 {offsets = [0, 256], sizes = [8, 128], strides = [1, 1]} : vector<8x512xf32> to vector<8x128xf32>
    %100 = math.tanh %99 : vector<8x128xf32>
    %101 = vector.extract_strided_slice %86 {offsets = [0, 384], sizes = [8, 128], strides = [1, 1]} : vector<8x512xf32> to vector<8x128xf32>
    %102 = arith.negf %101 : vector<8x128xf32>
    %103 = math.exp %102 : vector<8x128xf32>
    %cst_27 = arith.constant 1.000000e+00 : f32
    %104 = vector.broadcast %cst_27 : f32 to vector<8x128xf32>
    %105 = arith.addf %104, %103 : vector<8x128xf32>
    %106 = arith.divf %104, %105 : vector<8x128xf32>
    %107 = arith.mulf %98, %72 : vector<8x128xf32>
    %108 = arith.mulf %92, %100 : vector<8x128xf32>
    %109 = arith.addf %107, %108 : vector<8x128xf32>
    %110 = math.tanh %109 : vector<8x128xf32>
    %111 = arith.mulf %106, %110 : vector<8x128xf32>
    %112 = arith.truncf %111 : vector<8x128xf32> to vector<8x128xbf16>
    %113 = arith.index_cast %c2_i32 : i32 to index
    %c0_28 = arith.constant 0 : index
    %c0_29 = arith.constant 0 : index
    %114 = vector.load %arg3[%113, %c0_28, %c0_29] : memref<8x8x128xbf16, #tpu.memory_space<vmem>>, vector<1x8x128xbf16>
    %115 = vector.shape_cast %114 : vector<1x8x128xbf16> to vector<8x128xbf16>
    %116 = vector.shape_cast %112 : vector<8x128xbf16> to vector<1x8x128xbf16>
    tpu.vector_store %arg3[%113, %c0_28, %c0_29], %116 {strides = array<i32>} : memref<8x8x128xbf16, #tpu.memory_space<vmem>>, vector<1x8x128xbf16>,
    %c3_i32 = arith.constant 3 : i32
    %117 = arith.index_cast %c3_i32 : i32 to index
    %c0_30 = arith.constant 0 : index
    %c0_31 = arith.constant 0 : index
    %118 = vector.load %arg1[%117, %c0_30, %c0_31] : memref<8x8x512xbf16, #tpu.memory_space<vmem>>, vector<1x8x512xbf16>
    %119 = vector.shape_cast %118 : vector<1x8x512xbf16> to vector<8x512xbf16>
    %120 = arith.extf %119 : vector<8x512xbf16> to vector<8x512xf32>
    %121 = arith.truncf %111 : vector<8x128xf32> to vector<8x128xbf16>
    %cst_32 = arith.constant dense<0.000000e+00> : vector<8x512xf32>
    %122 = tpu.matmul %121, %3, %cst_32 {dimension_numbers = #tpu.dot_dimension_numbers<[1], [0], [0], [1], [0, 0, 1, 1], [], []>} : vector<8x128xbf16>, vector<128x512xbf16>, vector<8x512xf32> -> vector<8x512xf32>
    %123 = arith.addf %120, %122 : vector<8x512xf32>
    %124 = vector.extract_strided_slice %123 {offsets = [0, 0], sizes = [8, 128], strides = [1, 1]} : vector<8x512xf32> to vector<8x128xf32>
    %125 = arith.negf %124 : vector<8x128xf32>
    %126 = math.exp %125 : vector<8x128xf32>
    %cst_33 = arith.constant 1.000000e+00 : f32
    %127 = vector.broadcast %cst_33 : f32 to vector<8x128xf32>
    %128 = arith.addf %127, %126 : vector<8x128xf32>
    %129 = arith.divf %127, %128 : vector<8x128xf32>
    %130 = vector.extract_strided_slice %123 {offsets = [0, 128], sizes = [8, 128], strides = [1, 1]} : vector<8x512xf32> to vector<8x128xf32>
    %131 = arith.negf %130 : vector<8x128xf32>
    %132 = math.exp %131 : vector<8x128xf32>
    %cst_34 = arith.constant 1.000000e+00 : f32
    %133 = vector.broadcast %cst_34 : f32 to vector<8x128xf32>
    %134 = arith.addf %133, %132 : vector<8x128xf32>
    %135 = arith.divf %133, %134 : vector<8x128xf32>
    %136 = vector.extract_strided_slice %123 {offsets = [0, 256], sizes = [8, 128], strides = [1, 1]} : vector<8x512xf32> to vector<8x128xf32>
    %137 = math.tanh %136 : vector<8x128xf32>
    %138 = vector.extract_strided_slice %123 {offsets = [0, 384], sizes = [8, 128], strides = [1, 1]} : vector<8x512xf32> to vector<8x128xf32>
    %139 = arith.negf %138 : vector<8x128xf32>
    %140 = math.exp %139 : vector<8x128xf32>
    %cst_35 = arith.constant 1.000000e+00 : f32
    %141 = vector.broadcast %cst_35 : f32 to vector<8x128xf32>
    %142 = arith.addf %141, %140 : vector<8x128xf32>
    %143 = arith.divf %141, %142 : vector<8x128xf32>
    %144 = arith.mulf %135, %109 : vector<8x128xf32>
    %145 = arith.mulf %129, %137 : vector<8x128xf32>
    %146 = arith.addf %144, %145 : vector<8x128xf32>
    %147 = math.tanh %146 : vector<8x128xf32>
    %148 = arith.mulf %143, %147 : vector<8x128xf32>
    %149 = arith.truncf %148 : vector<8x128xf32> to vector<8x128xbf16>
    %150 = arith.index_cast %c3_i32 : i32 to index
    %c0_36 = arith.constant 0 : index
    %c0_37 = arith.constant 0 : index
    %151 = vector.load %arg3[%150, %c0_36, %c0_37] : memref<8x8x128xbf16, #tpu.memory_space<vmem>>, vector<1x8x128xbf16>
    %152 = vector.shape_cast %151 : vector<1x8x128xbf16> to vector<8x128xbf16>
    %153 = vector.shape_cast %149 : vector<8x128xbf16> to vector<1x8x128xbf16>
    tpu.vector_store %arg3[%150, %c0_36, %c0_37], %153 {strides = array<i32>} : memref<8x8x128xbf16, #tpu.memory_space<vmem>>, vector<1x8x128xbf16>,
    %c4_i32 = arith.constant 4 : i32
    %154 = arith.index_cast %c4_i32 : i32 to index
    %c0_38 = arith.constant 0 : index
    %c0_39 = arith.constant 0 : index
    %155 = vector.load %arg1[%154, %c0_38, %c0_39] : memref<8x8x512xbf16, #tpu.memory_space<vmem>>, vector<1x8x512xbf16>
    %156 = vector.shape_cast %155 : vector<1x8x512xbf16> to vector<8x512xbf16>
    %157 = arith.extf %156 : vector<8x512xbf16> to vector<8x512xf32>
    %158 = arith.truncf %148 : vector<8x128xf32> to vector<8x128xbf16>
    %cst_40 = arith.constant dense<0.000000e+00> : vector<8x512xf32>
    %159 = tpu.matmul %158, %3, %cst_40 {dimension_numbers = #tpu.dot_dimension_numbers<[1], [0], [0], [1], [0, 0, 1, 1], [], []>} : vector<8x128xbf16>, vector<128x512xbf16>, vector<8x512xf32> -> vector<8x512xf32>
    %160 = arith.addf %157, %159 : vector<8x512xf32>
    %161 = vector.extract_strided_slice %160 {offsets = [0, 0], sizes = [8, 128], strides = [1, 1]} : vector<8x512xf32> to vector<8x128xf32>
    %162 = arith.negf %161 : vector<8x128xf32>
    %163 = math.exp %162 : vector<8x128xf32>
    %cst_41 = arith.constant 1.000000e+00 : f32
    %164 = vector.broadcast %cst_41 : f32 to vector<8x128xf32>
    %165 = arith.addf %164, %163 : vector<8x128xf32>
    %166 = arith.divf %164, %165 : vector<8x128xf32>
    %167 = vector.extract_strided_slice %160 {offsets = [0, 128], sizes = [8, 128], strides = [1, 1]} : vector<8x512xf32> to vector<8x128xf32>
    %168 = arith.negf %167 : vector<8x128xf32>
    %169 = math.exp %168 : vector<8x128xf32>
    %cst_42 = arith.constant 1.000000e+00 : f32
    %170 = vector.broadcast %cst_42 : f32 to vector<8x128xf32>
    %171 = arith.addf %170, %169 : vector<8x128xf32>
    %172 = arith.divf %170, %171 : vector<8x128xf32>
    %173 = vector.extract_strided_slice %160 {offsets = [0, 256], sizes = [8, 128], strides = [1, 1]} : vector<8x512xf32> to vector<8x128xf32>
    %174 = math.tanh %173 : vector<8x128xf32>
    %175 = vector.extract_strided_slice %160 {offsets = [0, 384], sizes = [8, 128], strides = [1, 1]} : vector<8x512xf32> to vector<8x128xf32>
    %176 = arith.negf %175 : vector<8x128xf32>
    %177 = math.exp %176 : vector<8x128xf32>
    %cst_43 = arith.constant 1.000000e+00 : f32
    %178 = vector.broadcast %cst_43 : f32 to vector<8x128xf32>
    %179 = arith.addf %178, %177 : vector<8x128xf32>
    %180 = arith.divf %178, %179 : vector<8x128xf32>
    %181 = arith.mulf %172, %146 : vector<8x128xf32>
    %182 = arith.mulf %166, %174 : vector<8x128xf32>
    %183 = arith.addf %181, %182 : vector<8x128xf32>
    %184 = math.tanh %183 : vector<8x128xf32>
    %185 = arith.mulf %180, %184 : vector<8x128xf32>
    %186 = arith.truncf %185 : vector<8x128xf32> to vector<8x128xbf16>
    %187 = arith.index_cast %c4_i32 : i32 to index
    %c0_44 = arith.constant 0 : index
    %c0_45 = arith.constant 0 : index
    %188 = vector.load %arg3[%187, %c0_44, %c0_45] : memref<8x8x128xbf16, #tpu.memory_space<vmem>>, vector<1x8x128xbf16>
    %189 = vector.shape_cast %188 : vector<1x8x128xbf16> to vector<8x128xbf16>
    %190 = vector.shape_cast %186 : vector<8x128xbf16> to vector<1x8x128xbf16>
    tpu.vector_store %arg3[%187, %c0_44, %c0_45], %190 {strides = array<i32>} : memref<8x8x128xbf16, #tpu.memory_space<vmem>>, vector<1x8x128xbf16>,
    %c5_i32 = arith.constant 5 : i32
    %191 = arith.index_cast %c5_i32 : i32 to index
    %c0_46 = arith.constant 0 : index
    %c0_47 = arith.constant 0 : index
    %192 = vector.load %arg1[%191, %c0_46, %c0_47] : memref<8x8x512xbf16, #tpu.memory_space<vmem>>, vector<1x8x512xbf16>
    %193 = vector.shape_cast %192 : vector<1x8x512xbf16> to vector<8x512xbf16>
    %194 = arith.extf %193 : vector<8x512xbf16> to vector<8x512xf32>
    %195 = arith.truncf %185 : vector<8x128xf32> to vector<8x128xbf16>
    %cst_48 = arith.constant dense<0.000000e+00> : vector<8x512xf32>
    %196 = tpu.matmul %195, %3, %cst_48 {dimension_numbers = #tpu.dot_dimension_numbers<[1], [0], [0], [1], [0, 0, 1, 1], [], []>} : vector<8x128xbf16>, vector<128x512xbf16>, vector<8x512xf32> -> vector<8x512xf32>
    %197 = arith.addf %194, %196 : vector<8x512xf32>
    %198 = vector.extract_strided_slice %197 {offsets = [0, 0], sizes = [8, 128], strides = [1, 1]} : vector<8x512xf32> to vector<8x128xf32>
    %199 = arith.negf %198 : vector<8x128xf32>
    %200 = math.exp %199 : vector<8x128xf32>
    %cst_49 = arith.constant 1.000000e+00 : f32
    %201 = vector.broadcast %cst_49 : f32 to vector<8x128xf32>
    %202 = arith.addf %201, %200 : vector<8x128xf32>
    %203 = arith.divf %201, %202 : vector<8x128xf32>
    %204 = vector.extract_strided_slice %197 {offsets = [0, 128], sizes = [8, 128], strides = [1, 1]} : vector<8x512xf32> to vector<8x128xf32>
    %205 = arith.negf %204 : vector<8x128xf32>
    %206 = math.exp %205 : vector<8x128xf32>
    %cst_50 = arith.constant 1.000000e+00 : f32
    %207 = vector.broadcast %cst_50 : f32 to vector<8x128xf32>
    %208 = arith.addf %207, %206 : vector<8x128xf32>
    %209 = arith.divf %207, %208 : vector<8x128xf32>
    %210 = vector.extract_strided_slice %197 {offsets = [0, 256], sizes = [8, 128], strides = [1, 1]} : vector<8x512xf32> to vector<8x128xf32>
    %211 = math.tanh %210 : vector<8x128xf32>
    %212 = vector.extract_strided_slice %197 {offsets = [0, 384], sizes = [8, 128], strides = [1, 1]} : vector<8x512xf32> to vector<8x128xf32>
    %213 = arith.negf %212 : vector<8x128xf32>
    %214 = math.exp %213 : vector<8x128xf32>
    %cst_51 = arith.constant 1.000000e+00 : f32
    %215 = vector.broadcast %cst_51 : f32 to vector<8x128xf32>
    %216 = arith.addf %215, %214 : vector<8x128xf32>
    %217 = arith.divf %215, %216 : vector<8x128xf32>
    %218 = arith.mulf %209, %183 : vector<8x128xf32>
    %219 = arith.mulf %203, %211 : vector<8x128xf32>
    %220 = arith.addf %218, %219 : vector<8x128xf32>
    %221 = math.tanh %220 : vector<8x128xf32>
    %222 = arith.mulf %217, %221 : vector<8x128xf32>
    %223 = arith.truncf %222 : vector<8x128xf32> to vector<8x128xbf16>
    %224 = arith.index_cast %c5_i32 : i32 to index
    %c0_52 = arith.constant 0 : index
    %c0_53 = arith.constant 0 : index
    %225 = vector.load %arg3[%224, %c0_52, %c0_53] : memref<8x8x128xbf16, #tpu.memory_space<vmem>>, vector<1x8x128xbf16>
    %226 = vector.shape_cast %225 : vector<1x8x128xbf16> to vector<8x128xbf16>
    %227 = vector.shape_cast %223 : vector<8x128xbf16> to vector<1x8x128xbf16>
    tpu.vector_store %arg3[%224, %c0_52, %c0_53], %227 {strides = array<i32>} : memref<8x8x128xbf16, #tpu.memory_space<vmem>>, vector<1x8x128xbf16>,
    %c6_i32 = arith.constant 6 : i32
    %228 = arith.index_cast %c6_i32 : i32 to index
    %c0_54 = arith.constant 0 : index
    %c0_55 = arith.constant 0 : index
    %229 = vector.load %arg1[%228, %c0_54, %c0_55] : memref<8x8x512xbf16, #tpu.memory_space<vmem>>, vector<1x8x512xbf16>
    %230 = vector.shape_cast %229 : vector<1x8x512xbf16> to vector<8x512xbf16>
    %231 = arith.extf %230 : vector<8x512xbf16> to vector<8x512xf32>
    %232 = arith.truncf %222 : vector<8x128xf32> to vector<8x128xbf16>
    %cst_56 = arith.constant dense<0.000000e+00> : vector<8x512xf32>
    %233 = tpu.matmul %232, %3, %cst_56 {dimension_numbers = #tpu.dot_dimension_numbers<[1], [0], [0], [1], [0, 0, 1, 1], [], []>} : vector<8x128xbf16>, vector<128x512xbf16>, vector<8x512xf32> -> vector<8x512xf32>
    %234 = arith.addf %231, %233 : vector<8x512xf32>
    %235 = vector.extract_strided_slice %234 {offsets = [0, 0], sizes = [8, 128], strides = [1, 1]} : vector<8x512xf32> to vector<8x128xf32>
    %236 = arith.negf %235 : vector<8x128xf32>
    %237 = math.exp %236 : vector<8x128xf32>
    %cst_57 = arith.constant 1.000000e+00 : f32
    %238 = vector.broadcast %cst_57 : f32 to vector<8x128xf32>
    %239 = arith.addf %238, %237 : vector<8x128xf32>
    %240 = arith.divf %238, %239 : vector<8x128xf32>
    %241 = vector.extract_strided_slice %234 {offsets = [0, 128], sizes = [8, 128], strides = [1, 1]} : vector<8x512xf32> to vector<8x128xf32>
    %242 = arith.negf %241 : vector<8x128xf32>
    %243 = math.exp %242 : vector<8x128xf32>
    %cst_58 = arith.constant 1.000000e+00 : f32
    %244 = vector.broadcast %cst_58 : f32 to vector<8x128xf32>
    %245 = arith.addf %244, %243 : vector<8x128xf32>
    %246 = arith.divf %244, %245 : vector<8x128xf32>
    %247 = vector.extract_strided_slice %234 {offsets = [0, 256], sizes = [8, 128], strides = [1, 1]} : vector<8x512xf32> to vector<8x128xf32>
    %248 = math.tanh %247 : vector<8x128xf32>
    %249 = vector.extract_strided_slice %234 {offsets = [0, 384], sizes = [8, 128], strides = [1, 1]} : vector<8x512xf32> to vector<8x128xf32>
    %250 = arith.negf %249 : vector<8x128xf32>
    %251 = math.exp %250 : vector<8x128xf32>
    %cst_59 = arith.constant 1.000000e+00 : f32
    %252 = vector.broadcast %cst_59 : f32 to vector<8x128xf32>
    %253 = arith.addf %252, %251 : vector<8x128xf32>
    %254 = arith.divf %252, %253 : vector<8x128xf32>
    %255 = arith.mulf %246, %220 : vector<8x128xf32>
    %256 = arith.mulf %240, %248 : vector<8x128xf32>
    %257 = arith.addf %255, %256 : vector<8x128xf32>
    %258 = math.tanh %257 : vector<8x128xf32>
    %259 = arith.mulf %254, %258 : vector<8x128xf32>
    %260 = arith.truncf %259 : vector<8x128xf32> to vector<8x128xbf16>
    %261 = arith.index_cast %c6_i32 : i32 to index
    %c0_60 = arith.constant 0 : index
    %c0_61 = arith.constant 0 : index
    %262 = vector.load %arg3[%261, %c0_60, %c0_61] : memref<8x8x128xbf16, #tpu.memory_space<vmem>>, vector<1x8x128xbf16>
    %263 = vector.shape_cast %262 : vector<1x8x128xbf16> to vector<8x128xbf16>
    %264 = vector.shape_cast %260 : vector<8x128xbf16> to vector<1x8x128xbf16>
    tpu.vector_store %arg3[%261, %c0_60, %c0_61], %264 {strides = array<i32>} : memref<8x8x128xbf16, #tpu.memory_space<vmem>>, vector<1x8x128xbf16>,
    %c7_i32 = arith.constant 7 : i32
    %265 = arith.index_cast %c7_i32 : i32 to index
    %c0_62 = arith.constant 0 : index
    %c0_63 = arith.constant 0 : index
    %266 = vector.load %arg1[%265, %c0_62, %c0_63] : memref<8x8x512xbf16, #tpu.memory_space<vmem>>, vector<1x8x512xbf16>
    %267 = vector.shape_cast %266 : vector<1x8x512xbf16> to vector<8x512xbf16>
    %268 = arith.extf %267 : vector<8x512xbf16> to vector<8x512xf32>
    %269 = arith.truncf %259 : vector<8x128xf32> to vector<8x128xbf16>
    %cst_64 = arith.constant dense<0.000000e+00> : vector<8x512xf32>
    %270 = tpu.matmul %269, %3, %cst_64 {dimension_numbers = #tpu.dot_dimension_numbers<[1], [0], [0], [1], [0, 0, 1, 1], [], []>} : vector<8x128xbf16>, vector<128x512xbf16>, vector<8x512xf32> -> vector<8x512xf32>
    %271 = arith.addf %268, %270 : vector<8x512xf32>
    %272 = vector.extract_strided_slice %271 {offsets = [0, 0], sizes = [8, 128], strides = [1, 1]} : vector<8x512xf32> to vector<8x128xf32>
    %273 = arith.negf %272 : vector<8x128xf32>
    %274 = math.exp %273 : vector<8x128xf32>
    %cst_65 = arith.constant 1.000000e+00 : f32
    %275 = vector.broadcast %cst_65 : f32 to vector<8x128xf32>
    %276 = arith.addf %275, %274 : vector<8x128xf32>
    %277 = arith.divf %275, %276 : vector<8x128xf32>
    %278 = vector.extract_strided_slice %271 {offsets = [0, 128], sizes = [8, 128], strides = [1, 1]} : vector<8x512xf32> to vector<8x128xf32>
    %279 = arith.negf %278 : vector<8x128xf32>
    %280 = math.exp %279 : vector<8x128xf32>
    %cst_66 = arith.constant 1.000000e+00 : f32
    %281 = vector.broadcast %cst_66 : f32 to vector<8x128xf32>
    %282 = arith.addf %281, %280 : vector<8x128xf32>
    %283 = arith.divf %281, %282 : vector<8x128xf32>
    %284 = vector.extract_strided_slice %271 {offsets = [0, 256], sizes = [8, 128], strides = [1, 1]} : vector<8x512xf32> to vector<8x128xf32>
    %285 = math.tanh %284 : vector<8x128xf32>
    %286 = vector.extract_strided_slice %271 {offsets = [0, 384], sizes = [8, 128], strides = [1, 1]} : vector<8x512xf32> to vector<8x128xf32>
    %287 = arith.negf %286 : vector<8x128xf32>
    %288 = math.exp %287 : vector<8x128xf32>
    %cst_67 = arith.constant 1.000000e+00 : f32
    %289 = vector.broadcast %cst_67 : f32 to vector<8x128xf32>
    %290 = arith.addf %289, %288 : vector<8x128xf32>
    %291 = arith.divf %289, %290 : vector<8x128xf32>
    %292 = arith.mulf %283, %257 : vector<8x128xf32>
    %293 = arith.mulf %277, %285 : vector<8x128xf32>
    %294 = arith.addf %292, %293 : vector<8x128xf32>
    %295 = math.tanh %294 : vector<8x128xf32>
    %296 = arith.mulf %291, %295 : vector<8x128xf32>
    %297 = arith.truncf %296 : vector<8x128xf32> to vector<8x128xbf16>
    %298 = arith.index_cast %c7_i32 : i32 to index
    %c0_68 = arith.constant 0 : index
    %c0_69 = arith.constant 0 : index
    %299 = vector.load %arg3[%298, %c0_68, %c0_69] : memref<8x8x128xbf16, #tpu.memory_space<vmem>>, vector<1x8x128xbf16>
    %300 = vector.shape_cast %299 : vector<1x8x128xbf16> to vector<8x128xbf16>
    %301 = vector.shape_cast %297 : vector<8x128xbf16> to vector<1x8x128xbf16>
    tpu.vector_store %arg3[%298, %c0_68, %c0_69], %301 {strides = array<i32>} : memref<8x8x128xbf16, #tpu.memory_space<vmem>>, vector<1x8x128xbf16>,
    %c8_i32 = arith.constant 8 : i32
    %c0_70 = arith.constant 0 : index
    %c0_71 = arith.constant 0 : index
    %302 = vector.load %arg4[%c0_70, %c0_71] : memref<8x128xf32, #tpu.memory_space<vmem>>, vector<8x128xf32>
    tpu.vector_store %arg4[%c0_70, %c0_71], %296 {strides = array<i32>} : memref<8x128xf32, #tpu.memory_space<vmem>>, vector<8x128xf32>,
    %c0_72 = arith.constant 0 : index
    %c0_73 = arith.constant 0 : index
    %303 = vector.load %arg5[%c0_72, %c0_73] : memref<8x128xf32, #tpu.memory_space<vmem>>, vector<8x128xf32>
    tpu.vector_store %arg5[%c0_72, %c0_73], %294 {strides = array<i32>} : memref<8x128xf32, #tpu.memory_space<vmem>>, vector<8x128xf32>,
    return
  }
  func.func @transform_0(%arg0: i32) -> (i32, i32, i32) {
    %c0_i32 = arith.constant 0 : i32
    %c0_i32_0 = arith.constant 0 : i32
    %c0_i32_1 = arith.constant 0 : i32
    return %arg0, %c0_i32, %c0_i32_0 : i32, i32, i32
  }
  func.func @transform_1(%arg0: i32) -> (i32, i32) {
    %c0_i32 = arith.constant 0 : i32
    %c0_i32_0 = arith.constant 0 : i32
    %c0_i32_1 = arith.constant 0 : i32
    return %c0_i32, %c0_i32_0 : i32, i32
  }
  func.func @transform_2(%arg0: i32) -> (i32, i32, i32) {
    %c0_i32 = arith.constant 0 : i32
    %c0_i32_0 = arith.constant 0 : i32
    %c0_i32_1 = arith.constant 0 : i32
    return %arg0, %c0_i32, %c0_i32_0 : i32, i32, i32
  }
}

</mosaic_0001>

<llo_original>
// kernel: decoder_rnn_forward.3
$region0: #{decoder_rnn_forward.3}
  #allocation0 [shape = 'u32[]', space=smem, size = 0x4, offset = 0x4, fixed_abs, tag = 'smem constant byte address 0x4 - core index']
  #allocation1 [shape = 'u32[72,128]{1,0:T(1,128)}', space=vmem, size = 0x9000, scoped, tag = 'internal scratch']
  %s0 = inlined_call_operand.vmem [shape: bf16[64,32], index: 0, kind: input, shape index: {}]
  %s1 = inlined_call_operand.vmem [shape: bf16[32,512], index: 1, kind: input, shape index: {}]
  %s2 = inlined_call_operand.vmem [shape: f32[1,512], index: 2, kind: input, shape index: {}]
  %s3 = inlined_call_operand.vmem [shape: bf16[64,512], index: 3, kind: output, shape index: {}]
  %s4 = sld [smem:[#allocation0]]
  $region22: #{decoder_rnn_forward.3} parent=0
    _
  %s6 = ssub.s32 1, %s4
  %s7 = scalar_select 0, %s6, %s4
  // Predicated region
  $region2: #{decoder_rnn_forward.3} parent=0 // pred_check
    _
  $region3: #{decoder_rnn_forward.3} parent=0 // pred_check_branch
    %9 = sbr.rel (0) target = $region5
  $region4: #{decoder_rnn_forward.3} parent=0 // pred_region
    _
  $region5: #{decoder_rnn_forward.3} parent=0 // pred_fallthru
    _
  // Predicated region
  $region6: #{decoder_rnn_forward.3} parent=0 // pred_check
    _
  $region7: #{decoder_rnn_forward.3} parent=0 // pred_check_branch
    %11 = sbr.rel (0) target = $region9
  $region8: #{decoder_rnn_forward.3} parent=0 // pred_region
    _
  $region9: #{decoder_rnn_forward.3} parent=0 // pred_fallthru
    _
  // Predicated region
  $region10: #{decoder_rnn_forward.3} parent=0 // pred_check
    _
  $region11: #{decoder_rnn_forward.3} parent=0 // pred_check_branch
    %13 = sbr.rel (0) target = $region13
  $region12: #{decoder_rnn_forward.3} parent=0 // pred_region
    _
  $region13: #{decoder_rnn_forward.3} parent=0 // pred_fallthru
    _
  %v15 = vld [vmem:[%s0] sm:$0xf]
  %v16 = vld [vmem:[%s0 + $0x4] sm:$0xf]
  %v17 = vld [vmem:[%s0 + $0x8] sm:$0xf]
  %v18 = vld [vmem:[%s0 + $0xc] sm:$0xf]
  %v19 = vld [vmem:[%s0 + $0x10] sm:$0xf]
  %v20 = vld [vmem:[%s0 + $0x14] sm:$0xf]
  %v21 = vld [vmem:[%s0 + $0x18] sm:$0xf]
  %v22 = vld [vmem:[%s0 + $0x1c] sm:$0xf]
  %v23 = vld [vmem:[%s1] sm:$0xff]
  %v24 = vld [vmem:[%s1 + $0x8] sm:$0xff]
  %v25 = vld [vmem:[%s1 + $0x10] sm:$0xff]
  %v26 = vld [vmem:[%s1 + $0x18] sm:$0xff]
  %v27 = vld [vmem:[%s1 + $0x20] sm:$0xff]
  %v28 = vld [vmem:[%s1 + $0x28] sm:$0xff]
  %v29 = vld [vmem:[%s1 + $0x30] sm:$0xff]
  %v30 = vld [vmem:[%s1 + $0x38] sm:$0xff]
  %v31 = vld [vmem:[%s2] sm:$0xf]
  %v33 = vperm.slane %v31, 0
  %v34 = vperm.slane %v31, 1
  %v35 = vperm.slane %v31, 2
  %v36 = vperm.slane %v31, 3
  %v49 = vunpack.c.l.b16 %v15
  %v50 = vunpack.c.l.b16 %v16
  %v51 = vunpack.c.l.b16 %v17
  %v52 = vunpack.c.l.b16 %v18
  %v53 = vunpack.c.l.b16 %v19
  %v54 = vunpack.c.l.b16 %v20
  %v55 = vunpack.c.l.b16 %v21
  %v56 = vunpack.c.l.b16 %v22
  %v57 = vpack.c.b16 %v50, %v49
  %v58 = vpack.c.b16 %v52, %v51
  %v59 = vpack.c.b16 %v54, %v53
  %v60 = vpack.c.b16 %v56, %v55
  %v69 = vunpack.c.l.b16 %v23
  %v70 = vunpack.c.h.b16 %v23
  %v71 = vunpack.c.l.b16 %v24
  %v72 = vunpack.c.h.b16 %v24
  %v73 = vunpack.c.l.b16 %v25
  %v74 = vunpack.c.h.b16 %v25
  %v75 = vunpack.c.l.b16 %v26
  %v76 = vunpack.c.h.b16 %v26
  %v77 = vunpack.c.l.b16 %v27
  %v78 = vunpack.c.h.b16 %v27
  %v79 = vunpack.c.l.b16 %v28
  %v80 = vunpack.c.h.b16 %v28
  %v81 = vunpack.c.l.b16 %v29
  %v82 = vunpack.c.h.b16 %v29
  %v83 = vunpack.c.l.b16 %v30
  %v84 = vunpack.c.h.b16 %v30
  %v85 = vpack.c.b16 %v73, %v69
  %v86 = vpack.c.b16 %v74, %v70
  %v87 = vpack.c.b16 %v75, %v71
  %v88 = vpack.c.b16 %v76, %v72
  %v89 = vpack.c.b16 %v81, %v77
  %v90 = vpack.c.b16 %v82, %v78
  %v91 = vpack.c.b16 %v83, %v79
  %v92 = vpack.c.b16 %v84, %v80
  %vm101 = vcmask 261120
  %v103 = vsel %vm101, %v57, 0
  %v106 = vsel %vm101, %v58, 0
  %v109 = vsel %vm101, %v59, 0
  %v112 = vsel %vm101, %v60, 0
  %114 = vmatpush.bf16.msra.mxu0 0
  %115 = vmatpush.bf16.msra.mxu0 0
  %116 = vmatpush.bf16.msra.mxu0 0
  %117 = vmatpush.bf16.msra.mxu0 0
  %118 = vmatpush.bf16.msra.mxu0 0
  %119 = vmatpush.bf16.msra.mxu0 0
  %120 = vmatpush.bf16.msra.mxu0 %v89
  %121 = vmatpush.bf16.msra.mxu0 %v85
  %122 = vmatmul.bf16.gmra.mxu0 %v103
  %v123 = vpop.f32.mrf.mxu0
  %v124 = vadd.f32 %v33, %v123
  %v125 = vpop.f32.mrf.mxu0
  %v126 = vadd.f32 %v33, %v125
  %127 = vmatmul.bf16.gmra.mxu0 %v106
  %v128 = vpop.f32.mrf.mxu0
  %v129 = vadd.f32 %v33, %v128
  %v130 = vpop.f32.mrf.mxu0
  %v131 = vadd.f32 %v33, %v130
  %132 = vmatmul.bf16.gmra.mxu0 %v109
  %v133 = vpop.f32.mrf.mxu0
  %v134 = vadd.f32 %v33, %v133
  %v135 = vpop.f32.mrf.mxu0
  %v136 = vadd.f32 %v33, %v135
  %137 = vmatmul.bf16.gmra.mxu0 %v112
  %v138 = vpop.f32.mrf.mxu0
  %v139 = vadd.f32 %v33, %v138
  %v140 = vpop.f32.mrf.mxu0
  %v141 = vadd.f32 %v33, %v140
  %142 = vdwg.mxu0
  %143 = vmatpush.bf16.msra.mxu0 0
  %144 = vmatpush.bf16.msra.mxu0 0
  %145 = vmatpush.bf16.msra.mxu0 0
  %146 = vmatpush.bf16.msra.mxu0 0
  %147 = vmatpush.bf16.msra.mxu0 0
  %148 = vmatpush.bf16.msra.mxu0 0
  %149 = vmatpush.bf16.msra.mxu0 %v90
  %150 = vmatpush.bf16.msra.mxu0 %v86
  %151 = vmatmul.bf16.gmra.mxu0 %v103
  %v152 = vpop.f32.mrf.mxu0
  %v153 = vadd.f32 %v34, %v152
  %v154 = vpop.f32.mrf.mxu0
  %v155 = vadd.f32 %v34, %v154
  %156 = vmatmul.bf16.gmra.mxu0 %v106
  %v157 = vpop.f32.mrf.mxu0
  %v158 = vadd.f32 %v34, %v157
  %v159 = vpop.f32.mrf.mxu0
  %v160 = vadd.f32 %v34, %v159
  %161 = vmatmul.bf16.gmra.mxu0 %v109
  %v162 = vpop.f32.mrf.mxu0
  %v163 = vadd.f32 %v34, %v162
  %v164 = vpop.f32.mrf.mxu0
  %v165 = vadd.f32 %v34, %v164
  %166 = vmatmul.bf16.gmra.mxu0 %v112
  %v167 = vpop.f32.mrf.mxu0
  %v168 = vadd.f32 %v34, %v167
  %v169 = vpop.f32.mrf.mxu0
  %v170 = vadd.f32 %v34, %v169
  %171 = vdwg.mxu0
  %172 = vmatpush.bf16.msra.mxu0 0
  %173 = vmatpush.bf16.msra.mxu0 0
  %174 = vmatpush.bf16.msra.mxu0 0
  %175 = vmatpush.bf16.msra.mxu0 0
  %176 = vmatpush.bf16.msra.mxu0 0
  %177 = vmatpush.bf16.msra.mxu0 0
  %178 = vmatpush.bf16.msra.mxu0 %v91
  %179 = vmatpush.bf16.msra.mxu0 %v87
  %180 = vmatmul.bf16.gmra.mxu0 %v103
  %v181 = vpop.f32.mrf.mxu0
  %v182 = vadd.f32 %v35, %v181
  %v183 = vpop.f32.mrf.mxu0
  %v184 = vadd.f32 %v35, %v183
  %185 = vmatmul.bf16.gmra.mxu0 %v106
  %v186 = vpop.f32.mrf.mxu0
  %v187 = vadd.f32 %v35, %v186
  %v188 = vpop.f32.mrf.mxu0
  %v189 = vadd.f32 %v35, %v188
  %190 = vmatmul.bf16.gmra.mxu0 %v109
  %v191 = vpop.f32.mrf.mxu0
  %v192 = vadd.f32 %v35, %v191
  %v193 = vpop.f32.mrf.mxu0
  %v194 = vadd.f32 %v35, %v193
  %195 = vmatmul.bf16.gmra.mxu0 %v112
  %v196 = vpop.f32.mrf.mxu0
  %v197 = vadd.f32 %v35, %v196
  %v198 = vpop.f32.mrf.mxu0
  %v199 = vadd.f32 %v35, %v198
  %200 = vdwg.mxu0
  %201 = vmatpush.bf16.msra.mxu0 0
  %202 = vmatpush.bf16.msra.mxu0 0
  %203 = vmatpush.bf16.msra.mxu0 0
  %204 = vmatpush.bf16.msra.mxu0 0
  %205 = vmatpush.bf16.msra.mxu0 0
  %206 = vmatpush.bf16.msra.mxu0 0
  %207 = vmatpush.bf16.msra.mxu0 %v92
  %208 = vmatpush.bf16.msra.mxu0 %v88
  %209 = vmatmul.bf16.gmra.mxu0 %v103
  %v210 = vpop.f32.mrf.mxu0
  %v211 = vadd.f32 %v36, %v210
  %v212 = vpop.f32.mrf.mxu0
  %v213 = vadd.f32 %v36, %v212
  %214 = vmatmul.bf16.gmra.mxu0 %v106
  %v215 = vpop.f32.mrf.mxu0
  %v216 = vadd.f32 %v36, %v215
  %v217 = vpop.f32.mrf.mxu0
  %v218 = vadd.f32 %v36, %v217
  %219 = vmatmul.bf16.gmra.mxu0 %v109
  %v220 = vpop.f32.mrf.mxu0
  %v221 = vadd.f32 %v36, %v220
  %v222 = vpop.f32.mrf.mxu0
  %v223 = vadd.f32 %v36, %v222
  %224 = vmatmul.bf16.gmra.mxu0 %v112
  %v225 = vpop.f32.mrf.mxu0
  %v226 = vadd.f32 %v36, %v225
  %v227 = vpop.f32.mrf.mxu0
  %v228 = vadd.f32 %v36, %v227
  %229 = vdwg.mxu0
  %v230 = vpack.c.bf16 %v153, %v124
  %v231 = vpack.c.bf16 %v211, %v182
  %v232 = vpack.c.bf16 %v155, %v126
  %v233 = vpack.c.bf16 %v213, %v184
  %v234 = vpack.c.bf16 %v158, %v129
  %v235 = vpack.c.bf16 %v216, %v187
  %v236 = vpack.c.bf16 %v160, %v131
  %v237 = vpack.c.bf16 %v218, %v189
  %v238 = vpack.c.bf16 %v163, %v134
  %v239 = vpack.c.bf16 %v221, %v192
  %v240 = vpack.c.bf16 %v165, %v136
  %v241 = vpack.c.bf16 %v223, %v194
  %v242 = vpack.c.bf16 %v168, %v139
  %v243 = vpack.c.bf16 %v226, %v197
  %v244 = vpack.c.bf16 %v170, %v141
  %v245 = vpack.c.bf16 %v228, %v199
  %246 = vst [vmem:[%s3] sm:$0xff] %v230
  %247 = vst [vmem:[%s3 + $0x8] sm:$0xff] %v231
  %248 = vst [vmem:[%s3 + $0x10] sm:$0xff] %v232
  %249 = vst [vmem:[%s3 + $0x18] sm:$0xff] %v233
  %250 = vst [vmem:[%s3 + $0x20] sm:$0xff] %v234
  %251 = vst [vmem:[%s3 + $0x28] sm:$0xff] %v235
  %252 = vst [vmem:[%s3 + $0x30] sm:$0xff] %v236
  %253 = vst [vmem:[%s3 + $0x38] sm:$0xff] %v237
  %254 = vst [vmem:[%s3 + $0x40] sm:$0xff] %v238
  %255 = vst [vmem:[%s3 + $0x48] sm:$0xff] %v239
  %256 = vst [vmem:[%s3 + $0x50] sm:$0xff] %v240
  %257 = vst [vmem:[%s3 + $0x58] sm:$0xff] %v241
  %258 = vst [vmem:[%s3 + $0x60] sm:$0xff] %v242
  %259 = vst [vmem:[%s3 + $0x68] sm:$0xff] %v243
  %260 = vst [vmem:[%s3 + $0x70] sm:$0xff] %v244
  %261 = vst [vmem:[%s3 + $0x78] sm:$0xff] %v245
  // Predicated region
  $region14: #{decoder_rnn_forward.3} parent=0 // pred_check
    _
  $region15: #{decoder_rnn_forward.3} parent=0 // pred_check_branch
    %263 = sbr.rel (0) target = $region17
  $region16: #{decoder_rnn_forward.3} parent=0 // pred_region
    _
  $region17: #{decoder_rnn_forward.3} parent=0 // pred_fallthru
    _
  // Predicated region
  $region18: #{decoder_rnn_forward.3} parent=0 // pred_check
    _
  $region19: #{decoder_rnn_forward.3} parent=0 // pred_check_branch
    %265 = sbr.rel (0) target = $region21
  $region20: #{decoder_rnn_forward.3} parent=0 // pred_region
    _
  $region21: #{decoder_rnn_forward.3} parent=0 // pred_fallthru
    _

// kernel: decoder_rnn_forward.5
$region0: #{decoder_rnn_forward.5}
  #allocation0 [shape = 'u32[]', space=smem, size = 0x4, offset = 0x4, fixed_abs, tag = 'smem constant byte address 0x4 - core index']
  #allocation1 [shape = 'u32[72,128]{1,0:T(1,128)}', space=vmem, size = 0x9000, scoped, tag = 'internal scratch']
  %s0 = inlined_call_operand.vmem [shape: bf16[64,128], index: 0, kind: input, shape index: {}]
  %s1 = inlined_call_operand.vmem [shape: bf16[128,128], index: 1, kind: input, shape index: {}]
  %s2 = inlined_call_operand.vmem [shape: f32[1,128], index: 2, kind: input, shape index: {}]
  %s3 = inlined_call_operand.vmem [shape: f32[64,128], index: 3, kind: output, shape index: {}]
  %s4 = sld [smem:[#allocation0]]
  $region22: #{decoder_rnn_forward.5} parent=0
    _
  %s6 = ssub.s32 1, %s4
  %s7 = scalar_select 0, %s6, %s4
  // Predicated region
  $region2: #{decoder_rnn_forward.5} parent=0 // pred_check
    _
  $region3: #{decoder_rnn_forward.5} parent=0 // pred_check_branch
    %9 = sbr.rel (0) target = $region5
  $region4: #{decoder_rnn_forward.5} parent=0 // pred_region
    _
  $region5: #{decoder_rnn_forward.5} parent=0 // pred_fallthru
    _
  // Predicated region
  $region6: #{decoder_rnn_forward.5} parent=0 // pred_check
    _
  $region7: #{decoder_rnn_forward.5} parent=0 // pred_check_branch
    %11 = sbr.rel (0) target = $region9
  $region8: #{decoder_rnn_forward.5} parent=0 // pred_region
    _
  $region9: #{decoder_rnn_forward.5} parent=0 // pred_fallthru
    _
  // Predicated region
  $region10: #{decoder_rnn_forward.5} parent=0 // pred_check
    _
  $region11: #{decoder_rnn_forward.5} parent=0 // pred_check_branch
    %13 = sbr.rel (0) target = $region13
  $region12: #{decoder_rnn_forward.5} parent=0 // pred_region
    _
  $region13: #{decoder_rnn_forward.5} parent=0 // pred_fallthru
    _
  %v14 = vld [vmem:[%s0] sm:$0xf]
  %v15 = vld [vmem:[%s0 + $0x4] sm:$0xf]
  %v16 = vld [vmem:[%s0 + $0x8] sm:$0xf]
  %v17 = vld [vmem:[%s0 + $0xc] sm:$0xf]
  %v18 = vld [vmem:[%s0 + $0x10] sm:$0xf]
  %v19 = vld [vmem:[%s0 + $0x14] sm:$0xf]
  %v20 = vld [vmem:[%s0 + $0x18] sm:$0xf]
  %v21 = vld [vmem:[%s0 + $0x1c] sm:$0xf]
  %v22 = vld [vmem:[%s1] sm:$0xf]
  %v23 = vld [vmem:[%s1 + $0x4] sm:$0xf]
  %v24 = vld [vmem:[%s1 + $0x8] sm:$0xf]
  %v25 = vld [vmem:[%s1 + $0xc] sm:$0xf]
  %v26 = vld [vmem:[%s1 + $0x10] sm:$0xf]
  %v27 = vld [vmem:[%s1 + $0x14] sm:$0xf]
  %v28 = vld [vmem:[%s1 + $0x18] sm:$0xf]
  %v29 = vld [vmem:[%s1 + $0x1c] sm:$0xf]
  %v30 = vld [vmem:[%s1 + $0x20] sm:$0xf]
  %v31 = vld [vmem:[%s1 + $0x24] sm:$0xf]
  %v32 = vld [vmem:[%s1 + $0x28] sm:$0xf]
  %v33 = vld [vmem:[%s1 + $0x2c] sm:$0xf]
  %v34 = vld [vmem:[%s1 + $0x30] sm:$0xf]
  %v35 = vld [vmem:[%s1 + $0x34] sm:$0xf]
  %v36 = vld [vmem:[%s1 + $0x38] sm:$0xf]
  %v37 = vld [vmem:[%s1 + $0x3c] sm:$0xf]
  %v38 = vld [vmem:[%s2] sm:$0x1]
  %v40 = vperm.slane %v38, 0
  %v50 = vunpack.c.l.b16 %v14
  %v51 = vunpack.c.l.b16 %v15
  %v52 = vunpack.c.l.b16 %v16
  %v53 = vunpack.c.l.b16 %v17
  %v54 = vunpack.c.l.b16 %v18
  %v55 = vunpack.c.l.b16 %v19
  %v56 = vunpack.c.l.b16 %v20
  %v57 = vunpack.c.l.b16 %v21
  %v58 = vpack.c.b16 %v51, %v50
  %v59 = vpack.c.b16 %v53, %v52
  %v60 = vpack.c.b16 %v55, %v54
  %v61 = vpack.c.b16 %v57, %v56
  %v82 = vunpack.c.l.b16 %v22
  %v83 = vunpack.c.l.b16 %v23
  %v84 = vunpack.c.l.b16 %v24
  %v85 = vunpack.c.l.b16 %v25
  %v86 = vunpack.c.l.b16 %v26
  %v87 = vunpack.c.l.b16 %v27
  %v88 = vunpack.c.l.b16 %v28
  %v89 = vunpack.c.l.b16 %v29
  %v90 = vunpack.c.l.b16 %v30
  %v91 = vunpack.c.l.b16 %v31
  %v92 = vunpack.c.l.b16 %v32
  %v93 = vunpack.c.l.b16 %v33
  %v94 = vunpack.c.l.b16 %v34
  %v95 = vunpack.c.l.b16 %v35
  %v96 = vunpack.c.l.b16 %v36
  %v97 = vunpack.c.l.b16 %v37
  %v98 = vpack.c.b16 %v83, %v82
  %v99 = vpack.c.b16 %v85, %v84
  %v100 = vpack.c.b16 %v87, %v86
  %v101 = vpack.c.b16 %v89, %v88
  %v102 = vpack.c.b16 %v91, %v90
  %v103 = vpack.c.b16 %v93, %v92
  %v104 = vpack.c.b16 %v95, %v94
  %v105 = vpack.c.b16 %v97, %v96
  %114 = vmatpush.bf16.msra.mxu0 %v105
  %115 = vmatpush.bf16.msra.mxu0 %v104
  %116 = vmatpush.bf16.msra.mxu0 %v103
  %117 = vmatpush.bf16.msra.mxu0 %v102
  %118 = vmatpush.bf16.msra.mxu0 %v101
  %119 = vmatpush.bf16.msra.mxu0 %v100
  %120 = vmatpush.bf16.msra.mxu0 %v99
  %121 = vmatpush.bf16.msra.mxu0 %v98
  %122 = vmatmul.bf16.gmra.mxu0 %v58
  %v123 = vpop.f32.mrf.mxu0
  %v124 = vadd.f32 %v40, %v123
  %v125 = vpop.f32.mrf.mxu0
  %v126 = vadd.f32 %v40, %v125
  %127 = vmatmul.bf16.gmra.mxu0 %v59
  %v128 = vpop.f32.mrf.mxu0
  %v129 = vadd.f32 %v40, %v128
  %v130 = vpop.f32.mrf.mxu0
  %v131 = vadd.f32 %v40, %v130
  %132 = vmatmul.bf16.gmra.mxu0 %v60
  %v133 = vpop.f32.mrf.mxu0
  %v134 = vadd.f32 %v40, %v133
  %v135 = vpop.f32.mrf.mxu0
  %v136 = vadd.f32 %v40, %v135
  %137 = vmatmul.bf16.gmra.mxu0 %v61
  %v138 = vpop.f32.mrf.mxu0
  %v139 = vadd.f32 %v40, %v138
  %v140 = vpop.f32.mrf.mxu0
  %v141 = vadd.f32 %v40, %v140
  %142 = vdwg.mxu0
  %143 = vst [vmem:[%s3] sm:$0xff] %v124
  %144 = vst [vmem:[%s3 + $0x8] sm:$0xff] %v126
  %145 = vst [vmem:[%s3 + $0x10] sm:$0xff] %v129
  %146 = vst [vmem:[%s3 + $0x18] sm:$0xff] %v131
  %147 = vst [vmem:[%s3 + $0x20] sm:$0xff] %v134
  %148 = vst [vmem:[%s3 + $0x28] sm:$0xff] %v136
  %149 = vst [vmem:[%s3 + $0x30] sm:$0xff] %v139
  %150 = vst [vmem:[%s3 + $0x38] sm:$0xff] %v141
  // Predicated region
  $region14: #{decoder_rnn_forward.5} parent=0 // pred_check
    _
  $region15: #{decoder_rnn_forward.5} parent=0 // pred_check_branch
    %152 = sbr.rel (0) target = $region17
  $region16: #{decoder_rnn_forward.5} parent=0 // pred_region
    _
  $region17: #{decoder_rnn_forward.5} parent=0 // pred_fallthru
    _
  // Predicated region
  $region18: #{decoder_rnn_forward.5} parent=0 // pred_check
    _
  $region19: #{decoder_rnn_forward.5} parent=0 // pred_check_branch
    %154 = sbr.rel (0) target = $region21
  $region20: #{decoder_rnn_forward.5} parent=0 // pred_region
    _
  $region21: #{decoder_rnn_forward.5} parent=0 // pred_fallthru
    _

// kernel: decoder_rnn_forward.4
$region0: #{decoder_rnn_forward.4}
  #allocation0 [shape = 'u32[]', space=smem, size = 0x4, offset = 0x4, fixed_abs, tag = 'smem constant byte address 0x4 - core index']
  #allocation1 [shape = 'u32[72,128]{1,0:T(1,128)}', space=vmem, size = 0x9000, scoped, tag = 'internal scratch']
  #allocation2 [shape = 'f32[8,128]{1,0:T(8,128)}', space=vmem, size = 0x1000, scoped, tag = 'scratch operand']
  #allocation3 [shape = 'f32[8,128]{1,0:T(8,128)}', space=vmem, size = 0x1000, scoped, tag = 'scratch operand']
  %s0 = inlined_call_operand.vmem [shape: bf16[8,8,512], index: 0, kind: input, shape index: {}]
  %s1 = inlined_call_operand.vmem [shape: bf16[128,512], index: 1, kind: input, shape index: {}]
  %s2 = inlined_call_operand.vmem [shape: bf16[8,8,128], index: 2, kind: output, shape index: {}]
  %s3 = sld [smem:[#allocation0]]
  $region22: #{decoder_rnn_forward.4} parent=0
    _
  %s5 = ssub.s32 1, %s3
  %s6 = scalar_select 0, %s5, %s3
  // Predicated region
  $region2: #{decoder_rnn_forward.4} parent=0 // pred_check
    _
  $region3: #{decoder_rnn_forward.4} parent=0 // pred_check_branch
    %8 = sbr.rel (0) target = $region5
  $region4: #{decoder_rnn_forward.4} parent=0 // pred_region
    _
  $region5: #{decoder_rnn_forward.4} parent=0 // pred_fallthru
    _
  // Predicated region
  $region6: #{decoder_rnn_forward.4} parent=0 // pred_check
    _
  $region7: #{decoder_rnn_forward.4} parent=0 // pred_check_branch
    %10 = sbr.rel (0) target = $region9
  $region8: #{decoder_rnn_forward.4} parent=0 // pred_region
    _
  $region9: #{decoder_rnn_forward.4} parent=0 // pred_fallthru
    _
  %p11 = scmp.eq.s32.totalorder 0, 0
  // Predicated region
  $region10: #{decoder_rnn_forward.4} parent=0 // pred_check
    %p12 = pneg %p11
  $region11: #{decoder_rnn_forward.4} parent=0 // pred_check_branch
    %14 = sbr.rel (%p12) target = $region13
  $region12: #{decoder_rnn_forward.4} parent=0 // pred_region
    %15 = vst [vmem:[#allocation2] sm:$0xff] 0.0
    %16 = vst [vmem:[#allocation3] sm:$0xff] 0.0
  $region13: #{decoder_rnn_forward.4} parent=0 // pred_fallthru
    _
  %v17 = vld [vmem:[%s1] sm:$0xff]
  %v18 = vld [vmem:[%s1 + $0x8] sm:$0xff]
  %v19 = vld [vmem:[%s1 + $0x10] sm:$0xff]
  %v20 = vld [vmem:[%s1 + $0x18] sm:$0xff]
  %v21 = vld [vmem:[%s1 + $0x20] sm:$0xff]
  %v22 = vld [vmem:[%s1 + $0x28] sm:$0xff]
  %v23 = vld [vmem:[%s1 + $0x30] sm:$0xff]
  %v24 = vld [vmem:[%s1 + $0x38] sm:$0xff]
  %v25 = vld [vmem:[%s1 + $0x40] sm:$0xff]
  %v26 = vld [vmem:[%s1 + $0x48] sm:$0xff]
  %v27 = vld [vmem:[%s1 + $0x50] sm:$0xff]
  %v28 = vld [vmem:[%s1 + $0x58] sm:$0xff]
  %v29 = vld [vmem:[%s1 + $0x60] sm:$0xff]
  %v30 = vld [vmem:[%s1 + $0x68] sm:$0xff]
  %v31 = vld [vmem:[%s1 + $0x70] sm:$0xff]
  %v32 = vld [vmem:[%s1 + $0x78] sm:$0xff]
  %v33 = vld [vmem:[%s1 + $0x80] sm:$0xff]
  %v34 = vld [vmem:[%s1 + $0x88] sm:$0xff]
  %v35 = vld [vmem:[%s1 + $0x90] sm:$0xff]
  %v36 = vld [vmem:[%s1 + $0x98] sm:$0xff]
  %v37 = vld [vmem:[%s1 + $0xa0] sm:$0xff]
  %v38 = vld [vmem:[%s1 + $0xa8] sm:$0xff]
  %v39 = vld [vmem:[%s1 + $0xb0] sm:$0xff]
  %v40 = vld [vmem:[%s1 + $0xb8] sm:$0xff]
  %v41 = vld [vmem:[%s1 + $0xc0] sm:$0xff]
  %v42 = vld [vmem:[%s1 + $0xc8] sm:$0xff]
  %v43 = vld [vmem:[%s1 + $0xd0] sm:$0xff]
  %v44 = vld [vmem:[%s1 + $0xd8] sm:$0xff]
  %v45 = vld [vmem:[%s1 + $0xe0] sm:$0xff]
  %v46 = vld [vmem:[%s1 + $0xe8] sm:$0xff]
  %v47 = vld [vmem:[%s1 + $0xf0] sm:$0xff]
  %v48 = vld [vmem:[%s1 + $0xf8] sm:$0xff]
  %v49 = vld [vmem:[#allocation2] sm:$0xff]
  %v50 = vld [vmem:[#allocation3] sm:$0xff]
  %v51 = vld [vmem:[%s0] sm:$0xff]
  %v52 = vld [vmem:[%s0 + $0x8] sm:$0xff]
  %v53 = vunpack.c.l.bf16 %v51
  %v54 = vunpack.c.h.bf16 %v51
  %v55 = vunpack.c.l.bf16 %v52
  %v56 = vunpack.c.h.bf16 %v52
  %v57 = vpack.c.bf16 %v49, %v49
  %v90 = vunpack.c.l.b16 %v17
  %v91 = vunpack.c.h.b16 %v17
  %v92 = vunpack.c.l.b16 %v18
  %v93 = vunpack.c.h.b16 %v18
  %v94 = vunpack.c.l.b16 %v19
  %v95 = vunpack.c.h.b16 %v19
  %v96 = vunpack.c.l.b16 %v20
  %v97 = vunpack.c.h.b16 %v20
  %v98 = vunpack.c.l.b16 %v21
  %v99 = vunpack.c.h.b16 %v21
  %v100 = vunpack.c.l.b16 %v22
  %v101 = vunpack.c.h.b16 %v22
  %v102 = vunpack.c.l.b16 %v23
  %v103 = vunpack.c.h.b16 %v23
  %v104 = vunpack.c.l.b16 %v24
  %v105 = vunpack.c.h.b16 %v24
  %v106 = vunpack.c.l.b16 %v25
  %v107 = vunpack.c.h.b16 %v25
  %v108 = vunpack.c.l.b16 %v26
  %v109 = vunpack.c.h.b16 %v26
  %v110 = vunpack.c.l.b16 %v27
  %v111 = vunpack.c.h.b16 %v27
  %v112 = vunpack.c.l.b16 %v28
  %v113 = vunpack.c.h.b16 %v28
  %v114 = vunpack.c.l.b16 %v29
  %v115 = vunpack.c.h.b16 %v29
  %v116 = vunpack.c.l.b16 %v30
  %v117 = vunpack.c.h.b16 %v30
  %v118 = vunpack.c.l.b16 %v31
  %v119 = vunpack.c.h.b16 %v31
  %v120 = vunpack.c.l.b16 %v32
  %v121 = vunpack.c.h.b16 %v32
  %v122 = vunpack.c.l.b16 %v33
  %v123 = vunpack.c.h.b16 %v33
  %v124 = vunpack.c.l.b16 %v34
  %v125 = vunpack.c.h.b16 %v34
  %v126 = vunpack.c.l.b16 %v35
  %v127 = vunpack.c.h.b16 %v35
  %v128 = vunpack.c.l.b16 %v36
  %v129 = vunpack.c.h.b16 %v36
  %v130 = vunpack.c.l.b16 %v37
  %v131 = vunpack.c.h.b16 %v37
  %v132 = vunpack.c.l.b16 %v38
  %v133 = vunpack.c.h.b16 %v38
  %v134 = vunpack.c.l.b16 %v39
  %v135 = vunpack.c.h.b16 %v39
  %v136 = vunpack.c.l.b16 %v40
  %v137 = vunpack.c.h.b16 %v40
  %v138 = vunpack.c.l.b16 %v41
  %v139 = vunpack.c.h.b16 %v41
  %v140 = vunpack.c.l.b16 %v42
  %v141 = vunpack.c.h.b16 %v42
  %v142 = vunpack.c.l.b16 %v43
  %v143 = vunpack.c.h.b16 %v43
  %v144 = vunpack.c.l.b16 %v44
  %v145 = vunpack.c.h.b16 %v44
  %v146 = vunpack.c.l.b16 %v45
  %v147 = vunpack.c.h.b16 %v45
  %v148 = vunpack.c.l.b16 %v46
  %v149 = vunpack.c.h.b16 %v46
  %v150 = vunpack.c.l.b16 %v47
  %v151 = vunpack.c.h.b16 %v47
  %v152 = vunpack.c.l.b16 %v48
  %v153 = vunpack.c.h.b16 %v48
  %v154 = vpack.c.b16 %v94, %v90
  %v155 = vpack.c.b16 %v95, %v91
  %v156 = vpack.c.b16 %v96, %v92
  %v157 = vpack.c.b16 %v97, %v93
  %v158 = vpack.c.b16 %v102, %v98
  %v159 = vpack.c.b16 %v103, %v99
  %v160 = vpack.c.b16 %v104, %v100
  %v161 = vpack.c.b16 %v105, %v101
  %v162 = vpack.c.b16 %v110, %v106
  %v163 = vpack.c.b16 %v111, %v107
  %v164 = vpack.c.b16 %v112, %v108
  %v165 = vpack.c.b16 %v113, %v109
  %v166 = vpack.c.b16 %v118, %v114
  %v167 = vpack.c.b16 %v119, %v115
  %v168 = vpack.c.b16 %v120, %v116
  %v169 = vpack.c.b16 %v121, %v117
  %v170 = vpack.c.b16 %v126, %v122
  %v171 = vpack.c.b16 %v127, %v123
  %v172 = vpack.c.b16 %v128, %v124
  %v173 = vpack.c.b16 %v129, %v125
  %v174 = vpack.c.b16 %v134, %v130
  %v175 = vpack.c.b16 %v135, %v131
  %v176 = vpack.c.b16 %v136, %v132
  %v177 = vpack.c.b16 %v137, %v133
  %v178 = vpack.c.b16 %v142, %v138
  %v179 = vpack.c.b16 %v143, %v139
  %v180 = vpack.c.b16 %v144, %v140
  %v181 = vpack.c.b16 %v145, %v141
  %v182 = vpack.c.b16 %v150, %v146
  %v183 = vpack.c.b16 %v151, %v147
  %v184 = vpack.c.b16 %v152, %v148
  %v185 = vpack.c.b16 %v153, %v149
  %218 = vmatpush.bf16.msra.mxu0 %v182
  %219 = vmatpush.bf16.msra.mxu0 %v178
  %220 = vmatpush.bf16.msra.mxu0 %v174
  %221 = vmatpush.bf16.msra.mxu0 %v170
  %222 = vmatpush.bf16.msra.mxu0 %v166
  %223 = vmatpush.bf16.msra.mxu0 %v162
  %224 = vmatpush.bf16.msra.mxu0 %v158
  %225 = vmatpush.bf16.msra.mxu0 %v154
  %226 = vmatmul.bf16.gmra.mxu0 %v57
  %v227 = vpop.f32.mrf.mxu0
  %v228 = vadd.f32 0.0, %v227
  %v229 = vpop.f32.mrf.mxu0
  %230 = vdwg.mxu0
  %231 = vmatpush.bf16.msra.mxu0 %v183
  %232 = vmatpush.bf16.msra.mxu0 %v179
  %233 = vmatpush.bf16.msra.mxu0 %v175
  %234 = vmatpush.bf16.msra.mxu0 %v171
  %235 = vmatpush.bf16.msra.mxu0 %v167
  %236 = vmatpush.bf16.msra.mxu0 %v163
  %237 = vmatpush.bf16.msra.mxu0 %v159
  %238 = vmatpush.bf16.msra.mxu0 %v155
  %239 = vmatmul.bf16.gmra.mxu0 %v57
  %v240 = vpop.f32.mrf.mxu0
  %v241 = vadd.f32 0.0, %v240
  %v242 = vpop.f32.mrf.mxu0
  %243 = vdwg.mxu0
  %244 = vmatpush.bf16.msra.mxu0 %v184
  %245 = vmatpush.bf16.msra.mxu0 %v180
  %246 = vmatpush.bf16.msra.mxu0 %v176
  %247 = vmatpush.bf16.msra.mxu0 %v172
  %248 = vmatpush.bf16.msra.mxu0 %v168
  %249 = vmatpush.bf16.msra.mxu0 %v164
  %250 = vmatpush.bf16.msra.mxu0 %v160
  %251 = vmatpush.bf16.msra.mxu0 %v156
  %252 = vmatmul.bf16.gmra.mxu0 %v57
  %v253 = vpop.f32.mrf.mxu0
  %v254 = vadd.f32 0.0, %v253
  %v255 = vpop.f32.mrf.mxu0
  %256 = vdwg.mxu0
  %257 = vmatpush.bf16.msra.mxu0 %v185
  %258 = vmatpush.bf16.msra.mxu0 %v181
  %259 = vmatpush.bf16.msra.mxu0 %v177
  %260 = vmatpush.bf16.msra.mxu0 %v173
  %261 = vmatpush.bf16.msra.mxu0 %v169
  %262 = vmatpush.bf16.msra.mxu0 %v165
  %263 = vmatpush.bf16.msra.mxu0 %v161
  %264 = vmatpush.bf16.msra.mxu0 %v157
  %265 = vmatmul.bf16.gmra.mxu0 %v57
  %v266 = vpop.f32.mrf.mxu0
  %v267 = vadd.f32 0.0, %v266
  %v268 = vpop.f32.mrf.mxu0
  %269 = vdwg.mxu0
  %v270 = vadd.f32 %v53, %v228
  %v271 = vadd.f32 %v54, %v241
  %v272 = vadd.f32 %v55, %v254
  %v273 = vadd.f32 %v56, %v267
  %v274 = vxor.u32 %v270, 2147483648
  %v275 = vmul.f32 %v274, 1.442695
  %v276 = vpow.pop %v275
  %v277 = vadd.f32 %v276, 1.0
  %v278 = vrcp.pop %v277
  %v279 = vmul.f32 %v277, %v278
  %v280 = vsub.f32 1.0, %v279
  %v281 = vmul.f32 %v278, %v280
  %v282 = vadd.f32 %v278, %v281
  %vm283 = vweird.f32 %v277
  %vm284 = vweird.f32 %v278
  %vm285 = vmor %vm283, %vm284
  %v286 = vsel %vm285, %v278, %v282
  %v287 = vand.u32 2147483647, %v277
  %vm288 = vcmp.eq.f32.partialorder %v287, 8.507059e+37
  %v289 = vand.u32 %v277, 2147483648
  %v290 = vor.u32 1.1754944e-38, %v289
  %v291 = vsel %vm288, %v290, %v286
  %v292 = vmul.f32 1.0, %v291
  %v293 = vxor.u32 %v271, 2147483648
  %v294 = vmul.f32 %v293, 1.442695
  %v295 = vpow.pop %v294
  %v296 = vadd.f32 %v295, 1.0
  %v297 = vrcp.pop %v296
  %v298 = vmul.f32 %v296, %v297
  %v299 = vsub.f32 1.0, %v298
  %v300 = vmul.f32 %v297, %v299
  %v301 = vadd.f32 %v297, %v300
  %vm302 = vweird.f32 %v296
  %vm303 = vweird.f32 %v297
  %vm304 = vmor %vm302, %vm303
  %v305 = vsel %vm304, %v297, %v301
  %v306 = vand.u32 2147483647, %v296
  %vm307 = vcmp.eq.f32.partialorder %v306, 8.507059e+37
  %v308 = vand.u32 %v296, 2147483648
  %v309 = vor.u32 1.1754944e-38, %v308
  %v310 = vsel %vm307, %v309, %v305
  %v311 = vmul.f32 1.0, %v310
  %v312 = vtanh.pop %v272
  %v313 = vxor.u32 %v273, 2147483648
  %v314 = vmul.f32 %v313, 1.442695
  %v315 = vpow.pop %v314
  %v316 = vadd.f32 %v315, 1.0
  %v317 = vrcp.pop %v316
  %v318 = vmul.f32 %v316, %v317
  %v319 = vsub.f32 1.0, %v318
  %v320 = vmul.f32 %v317, %v319
  %v321 = vadd.f32 %v317, %v320
  %vm322 = vweird.f32 %v316
  %vm323 = vweird.f32 %v317
  %vm324 = vmor %vm322, %vm323
  %v325 = vsel %vm324, %v317, %v321
  %v326 = vand.u32 2147483647, %v316
  %vm327 = vcmp.eq.f32.partialorder %v326, 8.507059e+37
  %v328 = vand.u32 %v316, 2147483648
  %v329 = vor.u32 1.1754944e-38, %v328
  %v330 = vsel %vm327, %v329, %v325
  %v331 = vmul.f32 1.0, %v330
  %v332 = vmul.f32 %v311, %v50
  %v333 = vmul.f32 %v292, %v312
  %v334 = vadd.f32 %v332, %v333
  %v335 = vtanh.pop %v334
  %v336 = vmul.f32 %v331, %v335
  %v337 = vpack.c.bf16 %v336, %v336
  %338 = vst [vmem:[%s2] sm:$0xf] %v337
  %s339 = scalar_lea.vmem %s0, 16
  %v340 = vld [vmem:[%s339] sm:$0xff]
  %v341 = vld [vmem:[%s339 + $0x8] sm:$0xff]
  %v342 = vunpack.c.l.bf16 %v340
  %v343 = vunpack.c.h.bf16 %v340
  %v344 = vunpack.c.l.bf16 %v341
  %v345 = vunpack.c.h.bf16 %v341
  %346 = vmatpush.bf16.msra.mxu0 %v182
  %347 = vmatpush.bf16.msra.mxu0 %v178
  %348 = vmatpush.bf16.msra.mxu0 %v174
  %349 = vmatpush.bf16.msra.mxu0 %v170
  %350 = vmatpush.bf16.msra.mxu0 %v166
  %351 = vmatpush.bf16.msra.mxu0 %v162
  %352 = vmatpush.bf16.msra.mxu0 %v158
  %353 = vmatpush.bf16.msra.mxu0 %v154
  %354 = vmatmul.bf16.gmra.mxu0 %v337
  %v355 = vpop.f32.mrf.mxu0
  %v356 = vadd.f32 0.0, %v355
  %v357 = vpop.f32.mrf.mxu0
  %358 = vdwg.mxu0
  %359 = vmatpush.bf16.msra.mxu0 %v183
  %360 = vmatpush.bf16.msra.mxu0 %v179
  %361 = vmatpush.bf16.msra.mxu0 %v175
  %362 = vmatpush.bf16.msra.mxu0 %v171
  %363 = vmatpush.bf16.msra.mxu0 %v167
  %364 = vmatpush.bf16.msra.mxu0 %v163
  %365 = vmatpush.bf16.msra.mxu0 %v159
  %366 = vmatpush.bf16.msra.mxu0 %v155
  %367 = vmatmul.bf16.gmra.mxu0 %v337
  %v368 = vpop.f32.mrf.mxu0
  %v369 = vadd.f32 0.0, %v368
  %v370 = vpop.f32.mrf.mxu0
  %371 = vdwg.mxu0
  %372 = vmatpush.bf16.msra.mxu0 %v184
  %373 = vmatpush.bf16.msra.mxu0 %v180
  %374 = vmatpush.bf16.msra.mxu0 %v176
  %375 = vmatpush.bf16.msra.mxu0 %v172
  %376 = vmatpush.bf16.msra.mxu0 %v168
  %377 = vmatpush.bf16.msra.mxu0 %v164
  %378 = vmatpush.bf16.msra.mxu0 %v160
  %379 = vmatpush.bf16.msra.mxu0 %v156
  %380 = vmatmul.bf16.gmra.mxu0 %v337
  %v381 = vpop.f32.mrf.mxu0
  %v382 = vadd.f32 0.0, %v381
  %v383 = vpop.f32.mrf.mxu0
  %384 = vdwg.mxu0
  %385 = vmatpush.bf16.msra.mxu0 %v185
  %386 = vmatpush.bf16.msra.mxu0 %v181
  %387 = vmatpush.bf16.msra.mxu0 %v177
  %388 = vmatpush.bf16.msra.mxu0 %v173
  %389 = vmatpush.bf16.msra.mxu0 %v169
  %390 = vmatpush.bf16.msra.mxu0 %v165
  %391 = vmatpush.bf16.msra.mxu0 %v161
  %392 = vmatpush.bf16.msra.mxu0 %v157
  %393 = vmatmul.bf16.gmra.mxu0 %v337
  %v394 = vpop.f32.mrf.mxu0
  %v395 = vadd.f32 0.0, %v394
  %v396 = vpop.f32.mrf.mxu0
  %397 = vdwg.mxu0
  %v398 = vadd.f32 %v342, %v356
  %v399 = vadd.f32 %v343, %v369
  %v400 = vadd.f32 %v344, %v382
  %v401 = vadd.f32 %v345, %v395
  %v402 = vxor.u32 %v398, 2147483648
  %v403 = vmul.f32 %v402, 1.442695
  %v404 = vpow.pop %v403
  %v405 = vadd.f32 %v404, 1.0
  %v406 = vrcp.pop %v405
  %v407 = vmul.f32 %v405, %v406
  %v408 = vsub.f32 1.0, %v407
  %v409 = vmul.f32 %v406, %v408
  %v410 = vadd.f32 %v406, %v409
  %vm411 = vweird.f32 %v405
  %vm412 = vweird.f32 %v406
  %vm413 = vmor %vm411, %vm412
  %v414 = vsel %vm413, %v406, %v410
  %v415 = vand.u32 2147483647, %v405
  %vm416 = vcmp.eq.f32.partialorder %v415, 8.507059e+37
  %v417 = vand.u32 %v405, 2147483648
  %v418 = vor.u32 1.1754944e-38, %v417
  %v419 = vsel %vm416, %v418, %v414
  %v420 = vmul.f32 1.0, %v419
  %v421 = vxor.u32 %v399, 2147483648
  %v422 = vmul.f32 %v421, 1.442695
  %v423 = vpow.pop %v422
  %v424 = vadd.f32 %v423, 1.0
  %v425 = vrcp.pop %v424
  %v426 = vmul.f32 %v424, %v425
  %v427 = vsub.f32 1.0, %v426
  %v428 = vmul.f32 %v425, %v427
  %v429 = vadd.f32 %v425, %v428
  %vm430 = vweird.f32 %v424
  %vm431 = vweird.f32 %v425
  %vm432 = vmor %vm430, %vm431
  %v433 = vsel %vm432, %v425, %v429
  %v434 = vand.u32 2147483647, %v424
  %vm435 = vcmp.eq.f32.partialorder %v434, 8.507059e+37
  %v436 = vand.u32 %v424, 2147483648
  %v437 = vor.u32 1.1754944e-38, %v436
  %v438 = vsel %vm435, %v437, %v433
  %v439 = vmul.f32 1.0, %v438
  %v440 = vtanh.pop %v400
  %v441 = vxor.u32 %v401, 2147483648
  %v442 = vmul.f32 %v441, 1.442695
  %v443 = vpow.pop %v442
  %v444 = vadd.f32 %v443, 1.0
  %v445 = vrcp.pop %v444
  %v446 = vmul.f32 %v444, %v445
  %v447 = vsub.f32 1.0, %v446
  %v448 = vmul.f32 %v445, %v447
  %v449 = vadd.f32 %v445, %v448
  %vm450 = vweird.f32 %v444
  %vm451 = vweird.f32 %v445
  %vm452 = vmor %vm450, %vm451
  %v453 = vsel %vm452, %v445, %v449
  %v454 = vand.u32 2147483647, %v444
  %vm455 = vcmp.eq.f32.partialorder %v454, 8.507059e+37
  %v456 = vand.u32 %v444, 2147483648
  %v457 = vor.u32 1.1754944e-38, %v456
  %v458 = vsel %vm455, %v457, %v453
  %v459 = vmul.f32 1.0, %v458
  %v460 = vmul.f32 %v439, %v334
  %v461 = vmul.f32 %v420, %v440
  %v462 = vadd.f32 %v460, %v461
  %v463 = vtanh.pop %v462
  %v464 = vmul.f32 %v459, %v463
  %v465 = vpack.c.bf16 %v464, %v464
  %s466 = scalar_lea.vmem %s2, 4
  %467 = vst [vmem:[%s466] sm:$0xf] %v465
  %s468 = scalar_lea.vmem %s0, 32
  %v469 = vld [vmem:[%s468] sm:$0xff]
  %v470 = vld [vmem:[%s468 + $0x8] sm:$0xff]
  %v471 = vunpack.c.l.bf16 %v469
  %v472 = vunpack.c.h.bf16 %v469
  %v473 = vunpack.c.l.bf16 %v470
  %v474 = vunpack.c.h.bf16 %v470
  %475 = vmatpush.bf16.msra.mxu0 %v182
  %476 = vmatpush.bf16.msra.mxu0 %v178
  %477 = vmatpush.bf16.msra.mxu0 %v174
  %478 = vmatpush.bf16.msra.mxu0 %v170
  %479 = vmatpush.bf16.msra.mxu0 %v166
  %480 = vmatpush.bf16.msra.mxu0 %v162
  %481 = vmatpush.bf16.msra.mxu0 %v158
  %482 = vmatpush.bf16.msra.mxu0 %v154
  %483 = vmatmul.bf16.gmra.mxu0 %v465
  %v484 = vpop.f32.mrf.mxu0
  %v485 = vadd.f32 0.0, %v484
  %v486 = vpop.f32.mrf.mxu0
  %487 = vdwg.mxu0
  %488 = vmatpush.bf16.msra.mxu0 %v183
  %489 = vmatpush.bf16.msra.mxu0 %v179
  %490 = vmatpush.bf16.msra.mxu0 %v175
  %491 = vmatpush.bf16.msra.mxu0 %v171
  %492 = vmatpush.bf16.msra.mxu0 %v167
  %493 = vmatpush.bf16.msra.mxu0 %v163
  %494 = vmatpush.bf16.msra.mxu0 %v159
  %495 = vmatpush.bf16.msra.mxu0 %v155
  %496 = vmatmul.bf16.gmra.mxu0 %v465
  %v497 = vpop.f32.mrf.mxu0
  %v498 = vadd.f32 0.0, %v497
  %v499 = vpop.f32.mrf.mxu0
  %500 = vdwg.mxu0
  %501 = vmatpush.bf16.msra.mxu0 %v184
  %502 = vmatpush.bf16.msra.mxu0 %v180
  %503 = vmatpush.bf16.msra.mxu0 %v176
  %504 = vmatpush.bf16.msra.mxu0 %v172
  %505 = vmatpush.bf16.msra.mxu0 %v168
  %506 = vmatpush.bf16.msra.mxu0 %v164
  %507 = vmatpush.bf16.msra.mxu0 %v160
  %508 = vmatpush.bf16.msra.mxu0 %v156
  %509 = vmatmul.bf16.gmra.mxu0 %v465
  %v510 = vpop.f32.mrf.mxu0
  %v511 = vadd.f32 0.0, %v510
  %v512 = vpop.f32.mrf.mxu0
  %513 = vdwg.mxu0
  %514 = vmatpush.bf16.msra.mxu0 %v185
  %515 = vmatpush.bf16.msra.mxu0 %v181
  %516 = vmatpush.bf16.msra.mxu0 %v177
  %517 = vmatpush.bf16.msra.mxu0 %v173
  %518 = vmatpush.bf16.msra.mxu0 %v169
  %519 = vmatpush.bf16.msra.mxu0 %v165
  %520 = vmatpush.bf16.msra.mxu0 %v161
  %521 = vmatpush.bf16.msra.mxu0 %v157
  %522 = vmatmul.bf16.gmra.mxu0 %v465
  %v523 = vpop.f32.mrf.mxu0
  %v524 = vadd.f32 0.0, %v523
  %v525 = vpop.f32.mrf.mxu0
  %526 = vdwg.mxu0
  %v527 = vadd.f32 %v471, %v485
  %v528 = vadd.f32 %v472, %v498
  %v529 = vadd.f32 %v473, %v511
  %v530 = vadd.f32 %v474, %v524
  %v531 = vxor.u32 %v527, 2147483648
  %v532 = vmul.f32 %v531, 1.442695
  %v533 = vpow.pop %v532
  %v534 = vadd.f32 %v533, 1.0
  %v535 = vrcp.pop %v534
  %v536 = vmul.f32 %v534, %v535
  %v537 = vsub.f32 1.0, %v536
  %v538 = vmul.f32 %v535, %v537
  %v539 = vadd.f32 %v535, %v538
  %vm540 = vweird.f32 %v534
  %vm541 = vweird.f32 %v535
  %vm542 = vmor %vm540, %vm541
  %v543 = vsel %vm542, %v535, %v539
  %v544 = vand.u32 2147483647, %v534
  %vm545 = vcmp.eq.f32.partialorder %v544, 8.507059e+37
  %v546 = vand.u32 %v534, 2147483648
  %v547 = vor.u32 1.1754944e-38, %v546
  %v548 = vsel %vm545, %v547, %v543
  %v549 = vmul.f32 1.0, %v548
  %v550 = vxor.u32 %v528, 2147483648
  %v551 = vmul.f32 %v550, 1.442695
  %v552 = vpow.pop %v551
  %v553 = vadd.f32 %v552, 1.0
  %v554 = vrcp.pop %v553
  %v555 = vmul.f32 %v553, %v554
  %v556 = vsub.f32 1.0, %v555
  %v557 = vmul.f32 %v554, %v556
  %v558 = vadd.f32 %v554, %v557
  %vm559 = vweird.f32 %v553
  %vm560 = vweird.f32 %v554
  %vm561 = vmor %vm559, %vm560
  %v562 = vsel %vm561, %v554, %v558
  %v563 = vand.u32 2147483647, %v553
  %vm564 = vcmp.eq.f32.partialorder %v563, 8.507059e+37
  %v565 = vand.u32 %v553, 2147483648
  %v566 = vor.u32 1.1754944e-38, %v565
  %v567 = vsel %vm564, %v566, %v562
  %v568 = vmul.f32 1.0, %v567
  %v569 = vtanh.pop %v529
  %v570 = vxor.u32 %v530, 2147483648
  %v571 = vmul.f32 %v570, 1.442695
  %v572 = vpow.pop %v571
  %v573 = vadd.f32 %v572, 1.0
  %v574 = vrcp.pop %v573
  %v575 = vmul.f32 %v573, %v574
  %v576 = vsub.f32 1.0, %v575
  %v577 = vmul.f32 %v574, %v576
  %v578 = vadd.f32 %v574, %v577
  %vm579 = vweird.f32 %v573
  %vm580 = vweird.f32 %v574
  %vm581 = vmor %vm579, %vm580
  %v582 = vsel %vm581, %v574, %v578
  %v583 = vand.u32 2147483647, %v573
  %vm584 = vcmp.eq.f32.partialorder %v583, 8.507059e+37
  %v585 = vand.u32 %v573, 2147483648
  %v586 = vor.u32 1.1754944e-38, %v585
  %v587 = vsel %vm584, %v586, %v582
  %v588 = vmul.f32 1.0, %v587
  %v589 = vmul.f32 %v568, %v462
  %v590 = vmul.f32 %v549, %v569
  %v591 = vadd.f32 %v589, %v590
  %v592 = vtanh.pop %v591
  %v593 = vmul.f32 %v588, %v592
  %v594 = vpack.c.bf16 %v593, %v593
  %s595 = scalar_lea.vmem %s2, 8
  %596 = vst [vmem:[%s595] sm:$0xf] %v594
  %s597 = scalar_lea.vmem %s0, 48
  %v598 = vld [vmem:[%s597] sm:$0xff]
  %v599 = vld [vmem:[%s597 + $0x8] sm:$0xff]
  %v600 = vunpack.c.l.bf16 %v598
  %v601 = vunpack.c.h.bf16 %v598
  %v602 = vunpack.c.l.bf16 %v599
  %v603 = vunpack.c.h.bf16 %v599
  %604 = vmatpush.bf16.msra.mxu0 %v182
  %605 = vmatpush.bf16.msra.mxu0 %v178
  %606 = vmatpush.bf16.msra.mxu0 %v174
  %607 = vmatpush.bf16.msra.mxu0 %v170
  %608 = vmatpush.bf16.msra.mxu0 %v166
  %609 = vmatpush.bf16.msra.mxu0 %v162
  %610 = vmatpush.bf16.msra.mxu0 %v158
  %611 = vmatpush.bf16.msra.mxu0 %v154
  %612 = vmatmul.bf16.gmra.mxu0 %v594
  %v613 = vpop.f32.mrf.mxu0
  %v614 = vadd.f32 0.0, %v613
  %v615 = vpop.f32.mrf.mxu0
  %616 = vdwg.mxu0
  %617 = vmatpush.bf16.msra.mxu0 %v183
  %618 = vmatpush.bf16.msra.mxu0 %v179
  %619 = vmatpush.bf16.msra.mxu0 %v175
  %620 = vmatpush.bf16.msra.mxu0 %v171
  %621 = vmatpush.bf16.msra.mxu0 %v167
  %622 = vmatpush.bf16.msra.mxu0 %v163
  %623 = vmatpush.bf16.msra.mxu0 %v159
  %624 = vmatpush.bf16.msra.mxu0 %v155
  %625 = vmatmul.bf16.gmra.mxu0 %v594
  %v626 = vpop.f32.mrf.mxu0
  %v627 = vadd.f32 0.0, %v626
  %v628 = vpop.f32.mrf.mxu0
  %629 = vdwg.mxu0
  %630 = vmatpush.bf16.msra.mxu0 %v184
  %631 = vmatpush.bf16.msra.mxu0 %v180
  %632 = vmatpush.bf16.msra.mxu0 %v176
  %633 = vmatpush.bf16.msra.mxu0 %v172
  %634 = vmatpush.bf16.msra.mxu0 %v168
  %635 = vmatpush.bf16.msra.mxu0 %v164
  %636 = vmatpush.bf16.msra.mxu0 %v160
  %637 = vmatpush.bf16.msra.mxu0 %v156
  %638 = vmatmul.bf16.gmra.mxu0 %v594
  %v639 = vpop.f32.mrf.mxu0
  %v640 = vadd.f32 0.0, %v639
  %v641 = vpop.f32.mrf.mxu0
  %642 = vdwg.mxu0
  %643 = vmatpush.bf16.msra.mxu0 %v185
  %644 = vmatpush.bf16.msra.mxu0 %v181
  %645 = vmatpush.bf16.msra.mxu0 %v177
  %646 = vmatpush.bf16.msra.mxu0 %v173
  %647 = vmatpush.bf16.msra.mxu0 %v169
  %648 = vmatpush.bf16.msra.mxu0 %v165
  %649 = vmatpush.bf16.msra.mxu0 %v161
  %650 = vmatpush.bf16.msra.mxu0 %v157
  %651 = vmatmul.bf16.gmra.mxu0 %v594
  %v652 = vpop.f32.mrf.mxu0
  %v653 = vadd.f32 0.0, %v652
  %v654 = vpop.f32.mrf.mxu0
  %655 = vdwg.mxu0
  %v656 = vadd.f32 %v600, %v614
  %v657 = vadd.f32 %v601, %v627
  %v658 = vadd.f32 %v602, %v640
  %v659 = vadd.f32 %v603, %v653
  %v660 = vxor.u32 %v656, 2147483648
  %v661 = vmul.f32 %v660, 1.442695
  %v662 = vpow.pop %v661
  %v663 = vadd.f32 %v662, 1.0
  %v664 = vrcp.pop %v663
  %v665 = vmul.f32 %v663, %v664
  %v666 = vsub.f32 1.0, %v665
  %v667 = vmul.f32 %v664, %v666
  %v668 = vadd.f32 %v664, %v667
  %vm669 = vweird.f32 %v663
  %vm670 = vweird.f32 %v664
  %vm671 = vmor %vm669, %vm670
  %v672 = vsel %vm671, %v664, %v668
  %v673 = vand.u32 2147483647, %v663
  %vm674 = vcmp.eq.f32.partialorder %v673, 8.507059e+37
  %v675 = vand.u32 %v663, 2147483648
  %v676 = vor.u32 1.1754944e-38, %v675
  %v677 = vsel %vm674, %v676, %v672
  %v678 = vmul.f32 1.0, %v677
  %v679 = vxor.u32 %v657, 2147483648
  %v680 = vmul.f32 %v679, 1.442695
  %v681 = vpow.pop %v680
  %v682 = vadd.f32 %v681, 1.0
  %v683 = vrcp.pop %v682
  %v684 = vmul.f32 %v682, %v683
  %v685 = vsub.f32 1.0, %v684
  %v686 = vmul.f32 %v683, %v685
  %v687 = vadd.f32 %v683, %v686
  %vm688 = vweird.f32 %v682
  %vm689 = vweird.f32 %v683
  %vm690 = vmor %vm688, %vm689
  %v691 = vsel %vm690, %v683, %v687
  %v692 = vand.u32 2147483647, %v682
  %vm693 = vcmp.eq.f32.partialorder %v692, 8.507059e+37
  %v694 = vand.u32 %v682, 2147483648
  %v695 = vor.u32 1.1754944e-38, %v694
  %v696 = vsel %vm693, %v695, %v691
  %v697 = vmul.f32 1.0, %v696
  %v698 = vtanh.pop %v658
  %v699 = vxor.u32 %v659, 2147483648
  %v700 = vmul.f32 %v699, 1.442695
  %v701 = vpow.pop %v700
  %v702 = vadd.f32 %v701, 1.0
  %v703 = vrcp.pop %v702
  %v704 = vmul.f32 %v702, %v703
  %v705 = vsub.f32 1.0, %v704
  %v706 = vmul.f32 %v703, %v705
  %v707 = vadd.f32 %v703, %v706
  %vm708 = vweird.f32 %v702
  %vm709 = vweird.f32 %v703
  %vm710 = vmor %vm708, %vm709
  %v711 = vsel %vm710, %v703, %v707
  %v712 = vand.u32 2147483647, %v702
  %vm713 = vcmp.eq.f32.partialorder %v712, 8.507059e+37
  %v714 = vand.u32 %v702, 2147483648
  %v715 = vor.u32 1.1754944e-38, %v714
  %v716 = vsel %vm713, %v715, %v711
  %v717 = vmul.f32 1.0, %v716
  %v718 = vmul.f32 %v697, %v591
  %v719 = vmul.f32 %v678, %v698
  %v720 = vadd.f32 %v718, %v719
  %v721 = vtanh.pop %v720
  %v722 = vmul.f32 %v717, %v721
  %v723 = vpack.c.bf16 %v722, %v722
  %s724 = scalar_lea.vmem %s2, 12
  %725 = vst [vmem:[%s724] sm:$0xf] %v723
  %s726 = scalar_lea.vmem %s0, 64
  %v727 = vld [vmem:[%s726] sm:$0xff]
  %v728 = vld [vmem:[%s726 + $0x8] sm:$0xff]
  %v729 = vunpack.c.l.bf16 %v727
  %v730 = vunpack.c.h.bf16 %v727
  %v731 = vunpack.c.l.bf16 %v728
  %v732 = vunpack.c.h.bf16 %v728
  %733 = vmatpush.bf16.msra.mxu0 %v182
  %734 = vmatpush.bf16.msra.mxu0 %v178
  %735 = vmatpush.bf16.msra.mxu0 %v174
  %736 = vmatpush.bf16.msra.mxu0 %v170
  %737 = vmatpush.bf16.msra.mxu0 %v166
  %738 = vmatpush.bf16.msra.mxu0 %v162
  %739 = vmatpush.bf16.msra.mxu0 %v158
  %740 = vmatpush.bf16.msra.mxu0 %v154
  %741 = vmatmul.bf16.gmra.mxu0 %v723
  %v742 = vpop.f32.mrf.mxu0
  %v743 = vadd.f32 0.0, %v742
  %v744 = vpop.f32.mrf.mxu0
  %745 = vdwg.mxu0
  %746 = vmatpush.bf16.msra.mxu0 %v183
  %747 = vmatpush.bf16.msra.mxu0 %v179
  %748 = vmatpush.bf16.msra.mxu0 %v175
  %749 = vmatpush.bf16.msra.mxu0 %v171
  %750 = vmatpush.bf16.msra.mxu0 %v167
  %751 = vmatpush.bf16.msra.mxu0 %v163
  %752 = vmatpush.bf16.msra.mxu0 %v159
  %753 = vmatpush.bf16.msra.mxu0 %v155
  %754 = vmatmul.bf16.gmra.mxu0 %v723
  %v755 = vpop.f32.mrf.mxu0
  %v756 = vadd.f32 0.0, %v755
  %v757 = vpop.f32.mrf.mxu0
  %758 = vdwg.mxu0
  %759 = vmatpush.bf16.msra.mxu0 %v184
  %760 = vmatpush.bf16.msra.mxu0 %v180
  %761 = vmatpush.bf16.msra.mxu0 %v176
  %762 = vmatpush.bf16.msra.mxu0 %v172
  %763 = vmatpush.bf16.msra.mxu0 %v168
  %764 = vmatpush.bf16.msra.mxu0 %v164
  %765 = vmatpush.bf16.msra.mxu0 %v160
  %766 = vmatpush.bf16.msra.mxu0 %v156
  %767 = vmatmul.bf16.gmra.mxu0 %v723
  %v768 = vpop.f32.mrf.mxu0
  %v769 = vadd.f32 0.0, %v768
  %v770 = vpop.f32.mrf.mxu0
  %771 = vdwg.mxu0
  %772 = vmatpush.bf16.msra.mxu0 %v185
  %773 = vmatpush.bf16.msra.mxu0 %v181
  %774 = vmatpush.bf16.msra.mxu0 %v177
  %775 = vmatpush.bf16.msra.mxu0 %v173
  %776 = vmatpush.bf16.msra.mxu0 %v169
  %777 = vmatpush.bf16.msra.mxu0 %v165
  %778 = vmatpush.bf16.msra.mxu0 %v161
  %779 = vmatpush.bf16.msra.mxu0 %v157
  %780 = vmatmul.bf16.gmra.mxu0 %v723
  %v781 = vpop.f32.mrf.mxu0
  %v782 = vadd.f32 0.0, %v781
  %v783 = vpop.f32.mrf.mxu0
  %784 = vdwg.mxu0
  %v785 = vadd.f32 %v729, %v743
  %v786 = vadd.f32 %v730, %v756
  %v787 = vadd.f32 %v731, %v769
  %v788 = vadd.f32 %v732, %v782
  %v789 = vxor.u32 %v785, 2147483648
  %v790 = vmul.f32 %v789, 1.442695
  %v791 = vpow.pop %v790
  %v792 = vadd.f32 %v791, 1.0
  %v793 = vrcp.pop %v792
  %v794 = vmul.f32 %v792, %v793
  %v795 = vsub.f32 1.0, %v794
  %v796 = vmul.f32 %v793, %v795
  %v797 = vadd.f32 %v793, %v796
  %vm798 = vweird.f32 %v792
  %vm799 = vweird.f32 %v793
  %vm800 = vmor %vm798, %vm799
  %v801 = vsel %vm800, %v793, %v797
  %v802 = vand.u32 2147483647, %v792
  %vm803 = vcmp.eq.f32.partialorder %v802, 8.507059e+37
  %v804 = vand.u32 %v792, 2147483648
  %v805 = vor.u32 1.1754944e-38, %v804
  %v806 = vsel %vm803, %v805, %v801
  %v807 = vmul.f32 1.0, %v806
  %v808 = vxor.u32 %v786, 2147483648
  %v809 = vmul.f32 %v808, 1.442695
  %v810 = vpow.pop %v809
  %v811 = vadd.f32 %v810, 1.0
  %v812 = vrcp.pop %v811
  %v813 = vmul.f32 %v811, %v812
  %v814 = vsub.f32 1.0, %v813
  %v815 = vmul.f32 %v812, %v814
  %v816 = vadd.f32 %v812, %v815
  %vm817 = vweird.f32 %v811
  %vm818 = vweird.f32 %v812
  %vm819 = vmor %vm817, %vm818
  %v820 = vsel %vm819, %v812, %v816
  %v821 = vand.u32 2147483647, %v811
  %vm822 = vcmp.eq.f32.partialorder %v821, 8.507059e+37
  %v823 = vand.u32 %v811, 2147483648
  %v824 = vor.u32 1.1754944e-38, %v823
  %v825 = vsel %vm822, %v824, %v820
  %v826 = vmul.f32 1.0, %v825
  %v827 = vtanh.pop %v787
  %v828 = vxor.u32 %v788, 2147483648
  %v829 = vmul.f32 %v828, 1.442695
  %v830 = vpow.pop %v829
  %v831 = vadd.f32 %v830, 1.0
  %v832 = vrcp.pop %v831
  %v833 = vmul.f32 %v831, %v832
  %v834 = vsub.f32 1.0, %v833
  %v835 = vmul.f32 %v832, %v834
  %v836 = vadd.f32 %v832, %v835
  %vm837 = vweird.f32 %v831
  %vm838 = vweird.f32 %v832
  %vm839 = vmor %vm837, %vm838
  %v840 = vsel %vm839, %v832, %v836
  %v841 = vand.u32 2147483647, %v831
  %vm842 = vcmp.eq.f32.partialorder %v841, 8.507059e+37
  %v843 = vand.u32 %v831, 2147483648
  %v844 = vor.u32 1.1754944e-38, %v843
  %v845 = vsel %vm842, %v844, %v840
  %v846 = vmul.f32 1.0, %v845
  %v847 = vmul.f32 %v826, %v720
  %v848 = vmul.f32 %v807, %v827
  %v849 = vadd.f32 %v847, %v848
  %v850 = vtanh.pop %v849
  %v851 = vmul.f32 %v846, %v850
  %v852 = vpack.c.bf16 %v851, %v851
  %s853 = scalar_lea.vmem %s2, 16
  %854 = vst [vmem:[%s853] sm:$0xf] %v852
  %s855 = scalar_lea.vmem %s0, 80
  %v856 = vld [vmem:[%s855] sm:$0xff]
  %v857 = vld [vmem:[%s855 + $0x8] sm:$0xff]
  %v858 = vunpack.c.l.bf16 %v856
  %v859 = vunpack.c.h.bf16 %v856
  %v860 = vunpack.c.l.bf16 %v857
  %v861 = vunpack.c.h.bf16 %v857
  %862 = vmatpush.bf16.msra.mxu0 %v182
  %863 = vmatpush.bf16.msra.mxu0 %v178
  %864 = vmatpush.bf16.msra.mxu0 %v174
  %865 = vmatpush.bf16.msra.mxu0 %v170
  %866 = vmatpush.bf16.msra.mxu0 %v166
  %867 = vmatpush.bf16.msra.mxu0 %v162
  %868 = vmatpush.bf16.msra.mxu0 %v158
  %869 = vmatpush.bf16.msra.mxu0 %v154
  %870 = vmatmul.bf16.gmra.mxu0 %v852
  %v871 = vpop.f32.mrf.mxu0
  %v872 = vadd.f32 0.0, %v871
  %v873 = vpop.f32.mrf.mxu0
  %874 = vdwg.mxu0
  %875 = vmatpush.bf16.msra.mxu0 %v183
  %876 = vmatpush.bf16.msra.mxu0 %v179
  %877 = vmatpush.bf16.msra.mxu0 %v175
  %878 = vmatpush.bf16.msra.mxu0 %v171
  %879 = vmatpush.bf16.msra.mxu0 %v167
  %880 = vmatpush.bf16.msra.mxu0 %v163
  %881 = vmatpush.bf16.msra.mxu0 %v159
  %882 = vmatpush.bf16.msra.mxu0 %v155
  %883 = vmatmul.bf16.gmra.mxu0 %v852
  %v884 = vpop.f32.mrf.mxu0
  %v885 = vadd.f32 0.0, %v884
  %v886 = vpop.f32.mrf.mxu0
  %887 = vdwg.mxu0
  %888 = vmatpush.bf16.msra.mxu0 %v184
  %889 = vmatpush.bf16.msra.mxu0 %v180
  %890 = vmatpush.bf16.msra.mxu0 %v176
  %891 = vmatpush.bf16.msra.mxu0 %v172
  %892 = vmatpush.bf16.msra.mxu0 %v168
  %893 = vmatpush.bf16.msra.mxu0 %v164
  %894 = vmatpush.bf16.msra.mxu0 %v160
  %895 = vmatpush.bf16.msra.mxu0 %v156
  %896 = vmatmul.bf16.gmra.mxu0 %v852
  %v897 = vpop.f32.mrf.mxu0
  %v898 = vadd.f32 0.0, %v897
  %v899 = vpop.f32.mrf.mxu0
  %900 = vdwg.mxu0
  %901 = vmatpush.bf16.msra.mxu0 %v185
  %902 = vmatpush.bf16.msra.mxu0 %v181
  %903 = vmatpush.bf16.msra.mxu0 %v177
  %904 = vmatpush.bf16.msra.mxu0 %v173
  %905 = vmatpush.bf16.msra.mxu0 %v169
  %906 = vmatpush.bf16.msra.mxu0 %v165
  %907 = vmatpush.bf16.msra.mxu0 %v161
  %908 = vmatpush.bf16.msra.mxu0 %v157
  %909 = vmatmul.bf16.gmra.mxu0 %v852
  %v910 = vpop.f32.mrf.mxu0
  %v911 = vadd.f32 0.0, %v910
  %v912 = vpop.f32.mrf.mxu0
  %913 = vdwg.mxu0
  %v914 = vadd.f32 %v858, %v872
  %v915 = vadd.f32 %v859, %v885
  %v916 = vadd.f32 %v860, %v898
  %v917 = vadd.f32 %v861, %v911
  %v918 = vxor.u32 %v914, 2147483648
  %v919 = vmul.f32 %v918, 1.442695
  %v920 = vpow.pop %v919
  %v921 = vadd.f32 %v920, 1.0
  %v922 = vrcp.pop %v921
  %v923 = vmul.f32 %v921, %v922
  %v924 = vsub.f32 1.0, %v923
  %v925 = vmul.f32 %v922, %v924
  %v926 = vadd.f32 %v922, %v925
  %vm927 = vweird.f32 %v921
  %vm928 = vweird.f32 %v922
  %vm929 = vmor %vm927, %vm928
  %v930 = vsel %vm929, %v922, %v926
  %v931 = vand.u32 2147483647, %v921
  %vm932 = vcmp.eq.f32.partialorder %v931, 8.507059e+37
  %v933 = vand.u32 %v921, 2147483648
  %v934 = vor.u32 1.1754944e-38, %v933
  %v935 = vsel %vm932, %v934, %v930
  %v936 = vmul.f32 1.0, %v935
  %v937 = vxor.u32 %v915, 2147483648
  %v938 = vmul.f32 %v937, 1.442695
  %v939 = vpow.pop %v938
  %v940 = vadd.f32 %v939, 1.0
  %v941 = vrcp.pop %v940
  %v942 = vmul.f32 %v940, %v941
  %v943 = vsub.f32 1.0, %v942
  %v944 = vmul.f32 %v941, %v943
  %v945 = vadd.f32 %v941, %v944
  %vm946 = vweird.f32 %v940
  %vm947 = vweird.f32 %v941
  %vm948 = vmor %vm946, %vm947
  %v949 = vsel %vm948, %v941, %v945
  %v950 = vand.u32 2147483647, %v940
  %vm951 = vcmp.eq.f32.partialorder %v950, 8.507059e+37
  %v952 = vand.u32 %v940, 2147483648
  %v953 = vor.u32 1.1754944e-38, %v952
  %v954 = vsel %vm951, %v953, %v949
  %v955 = vmul.f32 1.0, %v954
  %v956 = vtanh.pop %v916
  %v957 = vxor.u32 %v917, 2147483648
  %v958 = vmul.f32 %v957, 1.442695
  %v959 = vpow.pop %v958
  %v960 = vadd.f32 %v959, 1.0
  %v961 = vrcp.pop %v960
  %v962 = vmul.f32 %v960, %v961
  %v963 = vsub.f32 1.0, %v962
  %v964 = vmul.f32 %v961, %v963
  %v965 = vadd.f32 %v961, %v964
  %vm966 = vweird.f32 %v960
  %vm967 = vweird.f32 %v961
  %vm968 = vmor %vm966, %vm967
  %v969 = vsel %vm968, %v961, %v965
  %v970 = vand.u32 2147483647, %v960
  %vm971 = vcmp.eq.f32.partialorder %v970, 8.507059e+37
  %v972 = vand.u32 %v960, 2147483648
  %v973 = vor.u32 1.1754944e-38, %v972
  %v974 = vsel %vm971, %v973, %v969
  %v975 = vmul.f32 1.0, %v974
  %v976 = vmul.f32 %v955, %v849
  %v977 = vmul.f32 %v936, %v956
  %v978 = vadd.f32 %v976, %v977
  %v979 = vtanh.pop %v978
  %v980 = vmul.f32 %v975, %v979
  %v981 = vpack.c.bf16 %v980, %v980
  %s982 = scalar_lea.vmem %s2, 20
  %983 = vst [vmem:[%s982] sm:$0xf] %v981
  %s984 = scalar_lea.vmem %s0, 96
  %v985 = vld [vmem:[%s984] sm:$0xff]
  %v986 = vld [vmem:[%s984 + $0x8] sm:$0xff]
  %v987 = vunpack.c.l.bf16 %v985
  %v988 = vunpack.c.h.bf16 %v985
  %v989 = vunpack.c.l.bf16 %v986
  %v990 = vunpack.c.h.bf16 %v986
  %991 = vmatpush.bf16.msra.mxu0 %v182
  %992 = vmatpush.bf16.msra.mxu0 %v178
  %993 = vmatpush.bf16.msra.mxu0 %v174
  %994 = vmatpush.bf16.msra.mxu0 %v170
  %995 = vmatpush.bf16.msra.mxu0 %v166
  %996 = vmatpush.bf16.msra.mxu0 %v162
  %997 = vmatpush.bf16.msra.mxu0 %v158
  %998 = vmatpush.bf16.msra.mxu0 %v154
  %999 = vmatmul.bf16.gmra.mxu0 %v981
  %v1000 = vpop.f32.mrf.mxu0
  %v1001 = vadd.f32 0.0, %v1000
  %v1002 = vpop.f32.mrf.mxu0
  %1003 = vdwg.mxu0
  %1004 = vmatpush.bf16.msra.mxu0 %v183
  %1005 = vmatpush.bf16.msra.mxu0 %v179
  %1006 = vmatpush.bf16.msra.mxu0 %v175
  %1007 = vmatpush.bf16.msra.mxu0 %v171
  %1008 = vmatpush.bf16.msra.mxu0 %v167
  %1009 = vmatpush.bf16.msra.mxu0 %v163
  %1010 = vmatpush.bf16.msra.mxu0 %v159
  %1011 = vmatpush.bf16.msra.mxu0 %v155
  %1012 = vmatmul.bf16.gmra.mxu0 %v981
  %v1013 = vpop.f32.mrf.mxu0
  %v1014 = vadd.f32 0.0, %v1013
  %v1015 = vpop.f32.mrf.mxu0
  %1016 = vdwg.mxu0
  %1017 = vmatpush.bf16.msra.mxu0 %v184
  %1018 = vmatpush.bf16.msra.mxu0 %v180
  %1019 = vmatpush.bf16.msra.mxu0 %v176
  %1020 = vmatpush.bf16.msra.mxu0 %v172
  %1021 = vmatpush.bf16.msra.mxu0 %v168
  %1022 = vmatpush.bf16.msra.mxu0 %v164
  %1023 = vmatpush.bf16.msra.mxu0 %v160
  %1024 = vmatpush.bf16.msra.mxu0 %v156
  %1025 = vmatmul.bf16.gmra.mxu0 %v981
  %v1026 = vpop.f32.mrf.mxu0
  %v1027 = vadd.f32 0.0, %v1026
  %v1028 = vpop.f32.mrf.mxu0
  %1029 = vdwg.mxu0
  %1030 = vmatpush.bf16.msra.mxu0 %v185
  %1031 = vmatpush.bf16.msra.mxu0 %v181
  %1032 = vmatpush.bf16.msra.mxu0 %v177
  %1033 = vmatpush.bf16.msra.mxu0 %v173
  %1034 = vmatpush.bf16.msra.mxu0 %v169
  %1035 = vmatpush.bf16.msra.mxu0 %v165
  %1036 = vmatpush.bf16.msra.mxu0 %v161
  %1037 = vmatpush.bf16.msra.mxu0 %v157
  %1038 = vmatmul.bf16.gmra.mxu0 %v981
  %v1039 = vpop.f32.mrf.mxu0
  %v1040 = vadd.f32 0.0, %v1039
  %v1041 = vpop.f32.mrf.mxu0
  %1042 = vdwg.mxu0
  %v1043 = vadd.f32 %v987, %v1001
  %v1044 = vadd.f32 %v988, %v1014
  %v1045 = vadd.f32 %v989, %v1027
  %v1046 = vadd.f32 %v990, %v1040
  %v1047 = vxor.u32 %v1043, 2147483648
  %v1048 = vmul.f32 %v1047, 1.442695
  %v1049 = vpow.pop %v1048
  %v1050 = vadd.f32 %v1049, 1.0
  %v1051 = vrcp.pop %v1050
  %v1052 = vmul.f32 %v1050, %v1051
  %v1053 = vsub.f32 1.0, %v1052
  %v1054 = vmul.f32 %v1051, %v1053
  %v1055 = vadd.f32 %v1051, %v1054
  %vm1056 = vweird.f32 %v1050
  %vm1057 = vweird.f32 %v1051
  %vm1058 = vmor %vm1056, %vm1057
  %v1059 = vsel %vm1058, %v1051, %v1055
  %v1060 = vand.u32 2147483647, %v1050
  %vm1061 = vcmp.eq.f32.partialorder %v1060, 8.507059e+37
  %v1062 = vand.u32 %v1050, 2147483648
  %v1063 = vor.u32 1.1754944e-38, %v1062
  %v1064 = vsel %vm1061, %v1063, %v1059
  %v1065 = vmul.f32 1.0, %v1064
  %v1066 = vxor.u32 %v1044, 2147483648
  %v1067 = vmul.f32 %v1066, 1.442695
  %v1068 = vpow.pop %v1067
  %v1069 = vadd.f32 %v1068, 1.0
  %v1070 = vrcp.pop %v1069
  %v1071 = vmul.f32 %v1069, %v1070
  %v1072 = vsub.f32 1.0, %v1071
  %v1073 = vmul.f32 %v1070, %v1072
  %v1074 = vadd.f32 %v1070, %v1073
  %vm1075 = vweird.f32 %v1069
  %vm1076 = vweird.f32 %v1070
  %vm1077 = vmor %vm1075, %vm1076
  %v1078 = vsel %vm1077, %v1070, %v1074
  %v1079 = vand.u32 2147483647, %v1069
  %vm1080 = vcmp.eq.f32.partialorder %v1079, 8.507059e+37
  %v1081 = vand.u32 %v1069, 2147483648
  %v1082 = vor.u32 1.1754944e-38, %v1081
  %v1083 = vsel %vm1080, %v1082, %v1078
  %v1084 = vmul.f32 1.0, %v1083
  %v1085 = vtanh.pop %v1045
  %v1086 = vxor.u32 %v1046, 2147483648
  %v1087 = vmul.f32 %v1086, 1.442695
  %v1088 = vpow.pop %v1087
  %v1089 = vadd.f32 %v1088, 1.0
  %v1090 = vrcp.pop %v1089
  %v1091 = vmul.f32 %v1089, %v1090
  %v1092 = vsub.f32 1.0, %v1091
  %v1093 = vmul.f32 %v1090, %v1092
  %v1094 = vadd.f32 %v1090, %v1093
  %vm1095 = vweird.f32 %v1089
  %vm1096 = vweird.f32 %v1090
  %vm1097 = vmor %vm1095, %vm1096
  %v1098 = vsel %vm1097, %v1090, %v1094
  %v1099 = vand.u32 2147483647, %v1089
  %vm1100 = vcmp.eq.f32.partialorder %v1099, 8.507059e+37
  %v1101 = vand.u32 %v1089, 2147483648
  %v1102 = vor.u32 1.1754944e-38, %v1101
  %v1103 = vsel %vm1100, %v1102, %v1098
  %v1104 = vmul.f32 1.0, %v1103
  %v1105 = vmul.f32 %v1084, %v978
  %v1106 = vmul.f32 %v1065, %v1085
  %v1107 = vadd.f32 %v1105, %v1106
  %v1108 = vtanh.pop %v1107
  %v1109 = vmul.f32 %v1104, %v1108
  %v1110 = vpack.c.bf16 %v1109, %v1109
  %s1111 = scalar_lea.vmem %s2, 24
  %1112 = vst [vmem:[%s1111] sm:$0xf] %v1110
  %s1113 = scalar_lea.vmem %s0, 112
  %v1114 = vld [vmem:[%s1113] sm:$0xff]
  %v1115 = vld [vmem:[%s1113 + $0x8] sm:$0xff]
  %v1116 = vunpack.c.l.bf16 %v1114
  %v1117 = vunpack.c.h.bf16 %v1114
  %v1118 = vunpack.c.l.bf16 %v1115
  %v1119 = vunpack.c.h.bf16 %v1115
  %1120 = vmatpush.bf16.msra.mxu0 %v182
  %1121 = vmatpush.bf16.msra.mxu0 %v178
  %1122 = vmatpush.bf16.msra.mxu0 %v174
  %1123 = vmatpush.bf16.msra.mxu0 %v170
  %1124 = vmatpush.bf16.msra.mxu0 %v166
  %1125 = vmatpush.bf16.msra.mxu0 %v162
  %1126 = vmatpush.bf16.msra.mxu0 %v158
  %1127 = vmatpush.bf16.msra.mxu0 %v154
  %1128 = vmatmul.bf16.gmra.mxu0 %v1110
  %v1129 = vpop.f32.mrf.mxu0
  %v1130 = vadd.f32 0.0, %v1129
  %v1131 = vpop.f32.mrf.mxu0
  %1132 = vdwg.mxu0
  %1133 = vmatpush.bf16.msra.mxu0 %v183
  %1134 = vmatpush.bf16.msra.mxu0 %v179
  %1135 = vmatpush.bf16.msra.mxu0 %v175
  %1136 = vmatpush.bf16.msra.mxu0 %v171
  %1137 = vmatpush.bf16.msra.mxu0 %v167
  %1138 = vmatpush.bf16.msra.mxu0 %v163
  %1139 = vmatpush.bf16.msra.mxu0 %v159
  %1140 = vmatpush.bf16.msra.mxu0 %v155
  %1141 = vmatmul.bf16.gmra.mxu0 %v1110
  %v1142 = vpop.f32.mrf.mxu0
  %v1143 = vadd.f32 0.0, %v1142
  %v1144 = vpop.f32.mrf.mxu0
  %1145 = vdwg.mxu0
  %1146 = vmatpush.bf16.msra.mxu0 %v184
  %1147 = vmatpush.bf16.msra.mxu0 %v180
  %1148 = vmatpush.bf16.msra.mxu0 %v176
  %1149 = vmatpush.bf16.msra.mxu0 %v172
  %1150 = vmatpush.bf16.msra.mxu0 %v168
  %1151 = vmatpush.bf16.msra.mxu0 %v164
  %1152 = vmatpush.bf16.msra.mxu0 %v160
  %1153 = vmatpush.bf16.msra.mxu0 %v156
  %1154 = vmatmul.bf16.gmra.mxu0 %v1110
  %v1155 = vpop.f32.mrf.mxu0
  %v1156 = vadd.f32 0.0, %v1155
  %v1157 = vpop.f32.mrf.mxu0
  %1158 = vdwg.mxu0
  %1159 = vmatpush.bf16.msra.mxu0 %v185
  %1160 = vmatpush.bf16.msra.mxu0 %v181
  %1161 = vmatpush.bf16.msra.mxu0 %v177
  %1162 = vmatpush.bf16.msra.mxu0 %v173
  %1163 = vmatpush.bf16.msra.mxu0 %v169
  %1164 = vmatpush.bf16.msra.mxu0 %v165
  %1165 = vmatpush.bf16.msra.mxu0 %v161
  %1166 = vmatpush.bf16.msra.mxu0 %v157
  %1167 = vmatmul.bf16.gmra.mxu0 %v1110
  %v1168 = vpop.f32.mrf.mxu0
  %v1169 = vadd.f32 0.0, %v1168
  %v1170 = vpop.f32.mrf.mxu0
  %1171 = vdwg.mxu0
  %v1172 = vadd.f32 %v1116, %v1130
  %v1173 = vadd.f32 %v1117, %v1143
  %v1174 = vadd.f32 %v1118, %v1156
  %v1175 = vadd.f32 %v1119, %v1169
  %v1176 = vxor.u32 %v1172, 2147483648
  %v1177 = vmul.f32 %v1176, 1.442695
  %v1178 = vpow.pop %v1177
  %v1179 = vadd.f32 %v1178, 1.0
  %v1180 = vrcp.pop %v1179
  %v1181 = vmul.f32 %v1179, %v1180
  %v1182 = vsub.f32 1.0, %v1181
  %v1183 = vmul.f32 %v1180, %v1182
  %v1184 = vadd.f32 %v1180, %v1183
  %vm1185 = vweird.f32 %v1179
  %vm1186 = vweird.f32 %v1180
  %vm1187 = vmor %vm1185, %vm1186
  %v1188 = vsel %vm1187, %v1180, %v1184
  %v1189 = vand.u32 2147483647, %v1179
  %vm1190 = vcmp.eq.f32.partialorder %v1189, 8.507059e+37
  %v1191 = vand.u32 %v1179, 2147483648
  %v1192 = vor.u32 1.1754944e-38, %v1191
  %v1193 = vsel %vm1190, %v1192, %v1188
  %v1194 = vmul.f32 1.0, %v1193
  %v1195 = vxor.u32 %v1173, 2147483648
  %v1196 = vmul.f32 %v1195, 1.442695
  %v1197 = vpow.pop %v1196
  %v1198 = vadd.f32 %v1197, 1.0
  %v1199 = vrcp.pop %v1198
  %v1200 = vmul.f32 %v1198, %v1199
  %v1201 = vsub.f32 1.0, %v1200
  %v1202 = vmul.f32 %v1199, %v1201
  %v1203 = vadd.f32 %v1199, %v1202
  %vm1204 = vweird.f32 %v1198
  %vm1205 = vweird.f32 %v1199
  %vm1206 = vmor %vm1204, %vm1205
  %v1207 = vsel %vm1206, %v1199, %v1203
  %v1208 = vand.u32 2147483647, %v1198
  %vm1209 = vcmp.eq.f32.partialorder %v1208, 8.507059e+37
  %v1210 = vand.u32 %v1198, 2147483648
  %v1211 = vor.u32 1.1754944e-38, %v1210
  %v1212 = vsel %vm1209, %v1211, %v1207
  %v1213 = vmul.f32 1.0, %v1212
  %v1214 = vtanh.pop %v1174
  %v1215 = vxor.u32 %v1175, 2147483648
  %v1216 = vmul.f32 %v1215, 1.442695
  %v1217 = vpow.pop %v1216
  %v1218 = vadd.f32 %v1217, 1.0
  %v1219 = vrcp.pop %v1218
  %v1220 = vmul.f32 %v1218, %v1219
  %v1221 = vsub.f32 1.0, %v1220
  %v1222 = vmul.f32 %v1219, %v1221
  %v1223 = vadd.f32 %v1219, %v1222
  %vm1224 = vweird.f32 %v1218
  %vm1225 = vweird.f32 %v1219
  %vm1226 = vmor %vm1224, %vm1225
  %v1227 = vsel %vm1226, %v1219, %v1223
  %v1228 = vand.u32 2147483647, %v1218
  %vm1229 = vcmp.eq.f32.partialorder %v1228, 8.507059e+37
  %v1230 = vand.u32 %v1218, 2147483648
  %v1231 = vor.u32 1.1754944e-38, %v1230
  %v1232 = vsel %vm1229, %v1231, %v1227
  %v1233 = vmul.f32 1.0, %v1232
  %v1234 = vmul.f32 %v1213, %v1107
  %v1235 = vmul.f32 %v1194, %v1214
  %v1236 = vadd.f32 %v1234, %v1235
  %v1237 = vtanh.pop %v1236
  %v1238 = vmul.f32 %v1233, %v1237
  %v1239 = vpack.c.bf16 %v1238, %v1238
  %s1240 = scalar_lea.vmem %s2, 28
  %1241 = vst [vmem:[%s1240] sm:$0xf] %v1239
  %1242 = vst [vmem:[#allocation2] sm:$0xff] %v1238
  %1243 = vst [vmem:[#allocation3] sm:$0xff] %v1236
  // Predicated region
  $region14: #{decoder_rnn_forward.4} parent=0 // pred_check
    _
  $region15: #{decoder_rnn_forward.4} parent=0 // pred_check_branch
    %1245 = sbr.rel (0) target = $region17
  $region16: #{decoder_rnn_forward.4} parent=0 // pred_region
    _
  $region17: #{decoder_rnn_forward.4} parent=0 // pred_fallthru
    _
  // Predicated region
  $region18: #{decoder_rnn_forward.4} parent=0 // pred_check
    _
  $region19: #{decoder_rnn_forward.4} parent=0 // pred_check_branch
    %1247 = sbr.rel (0) target = $region21
  $region20: #{decoder_rnn_forward.4} parent=0 // pred_region
    _
  $region21: #{decoder_rnn_forward.4} parent=0 // pred_fallthru
    _

</llo_original>
